<compile_context>
chip_gen: v7x
topology: tpu7x:2x2x1
jax: 0.10.0
libtpu: 0.0.40
codegen_flags: <defaults>
</compile_context>

<pallas_src>
import functools
import numpy as np
import jax
import jax.numpy as jnp
from jax.experimental import pallas as pl
from jax.experimental.pallas import tpu as pltpu

C_PAD = 128   # lane-dense channel padding (all channel dims padded to one vreg width)
TM = 128      # node tile; graphs are bin-packed so each graph fits inside one tile


# ----------------------------- Pallas kernel ------------------------------ #
def fused_gnn_kernel(counts_ref,
                     a_ref, x_ref,
                     w1_ref, t1_ref, w2_ref, t2_ref, w3_ref, t3_ref,
                     o_ref, *, tm):
    """All three GCNConv+BN+ReLU layers for one node tile (= a set of whole graphs)."""
    i = pl.program_id(0)
    a = a_ref[0]            # (tm, tm) bf16 — diagonal block of A_hat for this tile
    h = x_ref[0]            # (tm, C)  bf16 — packed node features for this tile

    def layer(h_bf16, w_ref, t_ref):
        # transform-first:  (H @ W') then A_hat @ (.) ;  bf16 operands, f32 accumulation.
        hw = jnp.dot(h_bf16, w_ref[...], preferred_element_type=jnp.float32)
        agg = jnp.dot(a, hw.astype(jnp.bfloat16), preferred_element_type=jnp.float32)
        return jnp.maximum(agg + t_ref[...], 0.0)

    h = layer(h, w1_ref, t1_ref).astype(jnp.bfloat16)
    h = layer(h, w2_ref, t2_ref).astype(jnp.bfloat16)
    out = layer(h, w3_ref, t3_ref)                      # f32

    # Zero this tile's padding rows so the un-sliced padded output is clean.
    valid = jax.lax.broadcasted_iota(jnp.int32, (tm, 1), 0) < counts_ref[i]
    o_ref[0] = jnp.where(valid, out, 0.0).astype(o_ref.dtype)


def gnn_encoder_forward(counts, a_blocks, x_packed, w1, t1, w2, t2, w3, t3):
    """Fused 3-layer GCN encoder over bin-packed graph tiles."""
    num_tiles, tm, _ = a_blocks.shape
    c = x_packed.shape[-1]

    # De-duplicated traffic / real flop counts (advisory for the XLA scheduler).
    flops = num_tiles * 3 * 2 * (tm * c * c + tm * tm * c)
    bytes_accessed = int(
        sum(arr.size * arr.dtype.itemsize
            for arr in (a_blocks, x_packed, w1, t1, w2, t2, w3, t3))
        + num_tiles * tm * c * 4)

    wspec = pl.BlockSpec((c, c), lambda i, cnt: (0, 0))   # folded weights, resident
    tspec = pl.BlockSpec((1, c), lambda i, cnt: (0, 0))   # folded shifts,  resident

    return pl.pallas_call(
        functools.partial(fused_gnn_kernel, tm=tm),
        out_shape=jax.ShapeDtypeStruct((num_tiles, tm, c), jnp.float32),
        grid_spec=pltpu.PrefetchScalarGridSpec(
            num_scalar_prefetch=1,                         # per-tile valid node counts
            grid=(num_tiles,),
            in_specs=[
                pl.BlockSpec((1, tm, tm), lambda i, cnt: (i, 0, 0)),   # A_hat diag block
                pl.BlockSpec((1, tm, c), lambda i, cnt: (i, 0, 0)),    # packed features
                wspec, tspec, wspec, tspec, wspec, tspec,
            ],
            out_specs=pl.BlockSpec((1, tm, c), lambda i, cnt: (i, 0, 0)),
        ),
        compiler_params=pltpu.CompilerParams(
            dimension_semantics=("parallel",),
            vmem_limit_bytes=32 * 1024 * 1024),
        cost_estimate=pl.CostEstimate(flops=flops, transcendentals=0,
                                      bytes_accessed=bytes_accessed),
    )(counts, a_blocks, x_packed, w1, t1, w2, t2, w3, t3)


# ------------------------------- host glue --------------------------------- #
def pack_graphs(nodes_per_graph, tm):
    """Greedy first-fit bin packing of whole graphs into node tiles of size tm."""
    assert max(nodes_per_graph) <= tm, "a single graph must fit inside one node tile"
    caps, bin_of, off_of = [], [], []
    for n in nodes_per_graph:
        placed = False
        for b in range(len(caps)):
            if caps[b] + n <= tm:
                bin_of.append(b); off_of.append(caps[b]); caps[b] += n; placed = True
                break
        if not placed:
            bin_of.append(len(caps)); off_of.append(0); caps.append(n)
    num_tiles = len(caps)
    node_tile = np.concatenate(
        [np.full(n, bin_of[g], np.int32) for g, n in enumerate(nodes_per_graph)])
    node_local = np.concatenate(
        [off_of[g] + np.arange(n, dtype=np.int32) for g, n in enumerate(nodes_per_graph)])
    counts = np.asarray(caps, np.int32)
    return num_tiles, node_tile, node_local, counts


def gcn_norm(edge_index, edge_weight, num_nodes):
    """PyG GCNConv gcn_norm: self-loops + symmetric D^-1/2 normalization."""
    src, dst = edge_index[0], edge_index[1]
    loop = jnp.arange(num_nodes, dtype=src.dtype)
    src = jnp.concatenate([src, loop])
    dst = jnp.concatenate([dst, loop])
    ew = jnp.concatenate([edge_weight, jnp.ones((num_nodes,), jnp.float32)])
    deg = jnp.zeros((num_nodes,), jnp.float32).at[dst].add(ew)
    dinv = jnp.where(deg > 0, jax.lax.rsqrt(deg), 0.0)
    norm = dinv[src] * ew * dinv[dst]
    return src, dst, norm


def build_blocks(edge_index, edge_weight, num_nodes, node_tile, node_local, num_tiles, tm):
    """Diagonal (tm, tm) blocks of A_hat — only the nonzero block-diagonal is materialized."""
    src, dst, norm = gcn_norm(edge_index, edge_weight, num_nodes)
    nt = jnp.asarray(node_tile)
    nl = jnp.asarray(node_local)
    a_blocks = jnp.zeros((num_tiles, tm, tm), jnp.float32).at[
        nt[dst], nl[dst], nl[src]].add(norm)
    return a_blocks


def init_params(key, in_ch, hid_ch, out_ch):
    """Raw module parameters; BN scale/shift from eval-mode running stats."""
    assert out_ch == hid_ch, "bn3 is BatchNorm1d(hidden_channels); requires out_ch == hid_ch"
    dims = [(in_ch, hid_ch), (hid_ch, hid_ch), (hid_ch, out_ch)]
    params = {}
    keys = jax.random.split(key, 3 * 5)
    for i, (fi, fo) in enumerate(dims, start=1):
        kw, kg, kb, km, kv = keys[(i - 1) * 5:(i - 1) * 5 + 5]
        bound = float(np.sqrt(6.0 / (fi + fo)))              # glorot-uniform (GCNConv default)
        w = jax.random.uniform(kw, (fi, fo), jnp.float32, -bound, bound)
        b = jnp.zeros((1, fo), jnp.float32)
        gamma = jax.random.uniform(kg, (fo,), jnp.float32, 0.5, 1.5)
        beta = jax.random.normal(kb, (fo,), jnp.float32) * 0.1
        rmean = jax.random.normal(km, (fo,), jnp.float32) * 0.1
        rvar = jax.random.uniform(kv, (fo,), jnp.float32, 0.5, 1.5)
        scale = gamma / jnp.sqrt(rvar + 1e-5)
        shift = beta - rmean * scale
        params[f"w{i}"], params[f"b{i}"] = w, b
        params[f"s{i}"], params[f"t{i}"] = scale.reshape(1, -1), shift.reshape(1, -1)
    return params


def fold_and_pad_params(params, c_pad):
    """Fold eval-mode BN into conv weights, zero-pad channels to c_pad; bf16 W, f32 shift."""
    folded = {}
    for i in (1, 2, 3):
        w, b = params[f"w{i}"], params[f"b{i}"]
        s, t = params[f"s{i}"], params[f"t{i}"]
        w_f = w * s                                          # per-output-channel scale
        t_f = b * s + t                                      # folded bias + BN shift
        fi, fo = w.shape
        folded[f"w{i}"] = (jnp.zeros((c_pad, c_pad), jnp.float32)
                           .at[:fi, :fo].set(w_f).astype(jnp.bfloat16))
        folded[f"t{i}"] = jnp.zeros((1, c_pad), jnp.float32).at[:, :fo].set(t_f)
    return folded


def reference_forward(edge_index, edge_weight, x, params):
    """Unfolded f32 reference: ReLU(BN(A_hat @ X @ W + b)) x3, dense A_hat."""
    n = x.shape[0]
    src, dst, norm = gcn_norm(edge_index, edge_weight, n)
    a = jnp.zeros((n, n), jnp.float32).at[dst, src].add(norm)
    h = x
    for i in (1, 2, 3):
        w, b = params[f"w{i}"], params[f"b{i}"]
        s, t = params[f"s{i}"], params[f"t{i}"]
        h = jnp.maximum((a @ (h @ w) + b) * s + t, 0.0)
    return h


def group_and_pad_device(h_valid, nodes_per_graph):
    """Device-side equivalent of the per-graph grouping + pad_sequence (no host loop)."""
    # TODO(synk): empty-graph `cached_zero_vector` branch not exercised (no empty graphs here).
    num_graphs = len(nodes_per_graph)
    max_nodes = max(max(nodes_per_graph), 1)
    gi = jnp.asarray(np.concatenate(
        [np.full(n, i, np.int32) for i, n in enumerate(nodes_per_graph)]))
    pi = jnp.asarray(np.concatenate(
        [np.arange(n, dtype=np.int32) for n in nodes_per_graph]))
    c = h_valid.shape[1]
    padded_vecs = jnp.zeros((num_graphs, max_nodes, c), h_valid.dtype).at[gi, pi].set(h_valid)
    padded_mask = jnp.zeros((num_graphs, max_nodes), jnp.float32).at[gi, pi].set(1.0)
    return padded_vecs, padded_mask


# --------------------------------- main ------------------------------------ #
if __name__ == "__main__":
    key = jax.random.PRNGKey(0)
    k_x, k_e, k_p = jax.random.split(key, 3)

    in_ch, hid_ch, out_ch = 16, 32, 32
    # Batch many small graphs (block-diagonal adjacency), as batch.batch would.
    nodes_per_graph = [5, 7, 9, 11, 6, 13, 4, 10, 8, 12, 3, 9, 7, 15, 6, 11]
    num_graphs = len(nodes_per_graph)
    N = sum(nodes_per_graph)                                  # 136 real nodes

    # bidirectional chain edges inside each graph
    edges = []
    off = 0
    for n in nodes_per_graph:
        for j in range(n - 1):
            edges.append((off + j, off + j + 1))
            edges.append((off + j + 1, off + j))
        off += n
    edge_index = jnp.asarray(np.array(edges, dtype=np.int32).T)            # (2, E)
    E = edge_index.shape[1]

    x = jax.random.normal(k_x, (N, in_ch), jnp.float32)                     # batch.x
    edge_attr = jax.random.uniform(k_e, (E, 1), jnp.float32, 0.5, 1.5)      # batch.edge_attr
    edge_weight = edge_attr[:, 0]                                           # .squeeze(1)

    params = init_params(k_p, in_ch, hid_ch, out_ch)
    folded = fold_and_pad_params(params, C_PAD)

    # Bin-pack whole graphs into TM-node tiles; only diagonal A_hat blocks are built.
    num_tiles, node_tile, node_local, counts = pack_graphs(nodes_per_graph, TM)
    a_blocks = build_blocks(edge_index, edge_weight, N, node_tile, node_local, num_tiles, TM)
    nt, nl = jnp.asarray(node_tile), jnp.asarray(node_local)
    x_cpad = jnp.zeros((N, C_PAD), jnp.float32).at[:, :in_ch].set(x)
    x_packed = jnp.zeros((num_tiles, TM, C_PAD), jnp.float32).at[nt, nl].set(x_cpad)

    # bf16 MXU operands for the dominant A / H / W streams; shifts & accumulation stay f32.
    a_bf = a_blocks.astype(jnp.bfloat16)
    x_bf = x_packed.astype(jnp.bfloat16)
    counts_dev = jnp.asarray(counts)

    fwd = jax.jit(gnn_encoder_forward)
    out_packed = fwd(counts_dev, a_bf, x_bf,
                     folded["w1"], folded["t1"],
                     folded["w2"], folded["t2"],
                     folded["w3"], folded["t3"])
    out_packed = jax.block_until_ready(out_packed)

    # Gather back to original node order, drop channel padding.
    h = out_packed[nt, nl][:, :out_ch]                                      # (N, out_ch)

    # sanity check against an unfolded f32 reference (bf16 operands => loose tolerance)
    ref = reference_forward(edge_index, edge_weight, x, params)
    max_err = float(jnp.max(jnp.abs(h - ref)))
    assert np.isfinite(max_err) and max_err < 0.5, f"kernel/reference mismatch: {max_err}"

    # per-graph grouping + pad_sequence equivalent, done on device (no host loop)
    padded_vecs, padded_mask = group_and_pad_device(h, nodes_per_graph)
    jax.block_until_ready((padded_vecs, padded_mask))

    assert padded_vecs.shape == (num_graphs, max(nodes_per_graph), out_ch)
    assert padded_mask.shape == (num_graphs, max(nodes_per_graph))
    assert bool(jnp.all(jnp.isfinite(padded_vecs)))
    # padding rows of the kernel output are exactly zero (masked in the kernel epilogue)
    assert float(jnp.max(jnp.abs(out_packed[0, int(counts[0]):]))) == 0.0

    print("KERNEL_OK")
</pallas_src>

<mosaic_0001>
module attributes {stable_mosaic.version = 11 : i64} {
  func.func @fused_gnn_kernel(%arg0: i32, %arg1: memref<2xi32, #tpu.memory_space<smem>>, %arg2: memref<1x128x128xbf16, #tpu.memory_space<vmem>>, %arg3: memref<1x128x128xbf16, #tpu.memory_space<vmem>>, %arg4: memref<128x128xbf16, #tpu.memory_space<vmem>>, %arg5: memref<1x128xf32, #tpu.memory_space<vmem>>, %arg6: memref<128x128xbf16, #tpu.memory_space<vmem>>, %arg7: memref<1x128xf32, #tpu.memory_space<vmem>>, %arg8: memref<128x128xbf16, #tpu.memory_space<vmem>>, %arg9: memref<1x128xf32, #tpu.memory_space<vmem>>, %arg10: memref<1x128x128xf32, #tpu.memory_space<vmem>>) attributes {dimension_semantics = [#tpu.dimension_semantics<parallel>], iteration_bounds = array<i64: 2>, scalar_prefetch = 1 : i64, scratch_operands = 0 : i64, tpu.core_type = #tpu.core_type<tc>, window_params = [{transform_indices = @transform_0, window_bounds = array<i64: 1, 128, 128>}, {transform_indices = @transform_1, window_bounds = array<i64: 1, 128, 128>}, {pipeline_mode = #tpu.pipeline_mode<synchronous>, transform_indices = @transform_2, window_bounds = array<i64: 128, 128>}, {pipeline_mode = #tpu.pipeline_mode<synchronous>, transform_indices = @transform_3, window_bounds = array<i64: 1, 128>}, {pipeline_mode = #tpu.pipeline_mode<synchronous>, transform_indices = @transform_4, window_bounds = array<i64: 128, 128>}, {pipeline_mode = #tpu.pipeline_mode<synchronous>, transform_indices = @transform_5, window_bounds = array<i64: 1, 128>}, {pipeline_mode = #tpu.pipeline_mode<synchronous>, transform_indices = @transform_6, window_bounds = array<i64: 128, 128>}, {pipeline_mode = #tpu.pipeline_mode<synchronous>, transform_indices = @transform_7, window_bounds = array<i64: 1, 128>}, {transform_indices = @transform_8, window_bounds = array<i64: 1, 128, 128>}]} {
    %c0 = arith.constant 0 : index
    %c0_0 = arith.constant 0 : index
    %c0_1 = arith.constant 0 : index
    %0 = vector.load %arg2[%c0, %c0_0, %c0_1] : memref<1x128x128xbf16, #tpu.memory_space<vmem>>, vector<1x128x128xbf16>
    %1 = vector.shape_cast %0 : vector<1x128x128xbf16> to vector<128x128xbf16>
    %c0_2 = arith.constant 0 : index
    %c0_3 = arith.constant 0 : index
    %c0_4 = arith.constant 0 : index
    %2 = vector.load %arg3[%c0_2, %c0_3, %c0_4] : memref<1x128x128xbf16, #tpu.memory_space<vmem>>, vector<1x128x128xbf16>
    %3 = vector.shape_cast %2 : vector<1x128x128xbf16> to vector<128x128xbf16>
    %c0_5 = arith.constant 0 : index
    %c0_6 = arith.constant 0 : index
    %4 = vector.load %arg4[%c0_5, %c0_6] : memref<128x128xbf16, #tpu.memory_space<vmem>>, vector<128x128xbf16>
    %cst = arith.constant dense<0.000000e+00> : vector<128x128xf32>
    %5 = tpu.matmul %3, %4, %cst {dimension_numbers = #tpu.dot_dimension_numbers<[1], [0], [0], [1], [0, 0, 1, 1], [], []>} : vector<128x128xbf16>, vector<128x128xbf16>, vector<128x128xf32> -> vector<128x128xf32>
    %6 = arith.truncf %5 : vector<128x128xf32> to vector<128x128xbf16>
    %cst_7 = arith.constant dense<0.000000e+00> : vector<128x128xf32>
    %7 = tpu.matmul %1, %6, %cst_7 {dimension_numbers = #tpu.dot_dimension_numbers<[1], [0], [0], [1], [0, 0, 1, 1], [], []>} : vector<128x128xbf16>, vector<128x128xbf16>, vector<128x128xf32> -> vector<128x128xf32>
    %c0_8 = arith.constant 0 : index
    %c0_9 = arith.constant 0 : index
    %8 = vector.load %arg5[%c0_8, %c0_9] : memref<1x128xf32, #tpu.memory_space<vmem>>, vector<1x128xf32>
    %9 = vector.broadcast %8 : vector<1x128xf32> to vector<128x128xf32>
    %10 = arith.addf %7, %9 : vector<128x128xf32>
    %cst_10 = arith.constant 0.000000e+00 : f32
    %11 = vector.broadcast %cst_10 : f32 to vector<128x128xf32>
    %12 = arith.maximumf %10, %11 : vector<128x128xf32>
    %13 = arith.truncf %12 : vector<128x128xf32> to vector<128x128xbf16>
    %c0_11 = arith.constant 0 : index
    %c0_12 = arith.constant 0 : index
    %14 = vector.load %arg6[%c0_11, %c0_12] : memref<128x128xbf16, #tpu.memory_space<vmem>>, vector<128x128xbf16>
    %cst_13 = arith.constant dense<0.000000e+00> : vector<128x128xf32>
    %15 = tpu.matmul %13, %14, %cst_13 {dimension_numbers = #tpu.dot_dimension_numbers<[1], [0], [0], [1], [0, 0, 1, 1], [], []>} : vector<128x128xbf16>, vector<128x128xbf16>, vector<128x128xf32> -> vector<128x128xf32>
    %16 = arith.truncf %15 : vector<128x128xf32> to vector<128x128xbf16>
    %cst_14 = arith.constant dense<0.000000e+00> : vector<128x128xf32>
    %17 = tpu.matmul %1, %16, %cst_14 {dimension_numbers = #tpu.dot_dimension_numbers<[1], [0], [0], [1], [0, 0, 1, 1], [], []>} : vector<128x128xbf16>, vector<128x128xbf16>, vector<128x128xf32> -> vector<128x128xf32>
    %c0_15 = arith.constant 0 : index
    %c0_16 = arith.constant 0 : index
    %18 = vector.load %arg7[%c0_15, %c0_16] : memref<1x128xf32, #tpu.memory_space<vmem>>, vector<1x128xf32>
    %19 = vector.broadcast %18 : vector<1x128xf32> to vector<128x128xf32>
    %20 = arith.addf %17, %19 : vector<128x128xf32>
    %cst_17 = arith.constant 0.000000e+00 : f32
    %21 = vector.broadcast %cst_17 : f32 to vector<128x128xf32>
    %22 = arith.maximumf %20, %21 : vector<128x128xf32>
    %23 = arith.truncf %22 : vector<128x128xf32> to vector<128x128xbf16>
    %c0_18 = arith.constant 0 : index
    %c0_19 = arith.constant 0 : index
    %24 = vector.load %arg8[%c0_18, %c0_19] : memref<128x128xbf16, #tpu.memory_space<vmem>>, vector<128x128xbf16>
    %cst_20 = arith.constant dense<0.000000e+00> : vector<128x128xf32>
    %25 = tpu.matmul %23, %24, %cst_20 {dimension_numbers = #tpu.dot_dimension_numbers<[1], [0], [0], [1], [0, 0, 1, 1], [], []>} : vector<128x128xbf16>, vector<128x128xbf16>, vector<128x128xf32> -> vector<128x128xf32>
    %26 = arith.truncf %25 : vector<128x128xf32> to vector<128x128xbf16>
    %cst_21 = arith.constant dense<0.000000e+00> : vector<128x128xf32>
    %27 = tpu.matmul %1, %26, %cst_21 {dimension_numbers = #tpu.dot_dimension_numbers<[1], [0], [0], [1], [0, 0, 1, 1], [], []>} : vector<128x128xbf16>, vector<128x128xbf16>, vector<128x128xf32> -> vector<128x128xf32>
    %c0_22 = arith.constant 0 : index
    %c0_23 = arith.constant 0 : index
    %28 = vector.load %arg9[%c0_22, %c0_23] : memref<1x128xf32, #tpu.memory_space<vmem>>, vector<1x128xf32>
    %29 = vector.broadcast %28 : vector<1x128xf32> to vector<128x128xf32>
    %30 = arith.addf %27, %29 : vector<128x128xf32>
    %cst_24 = arith.constant 0.000000e+00 : f32
    %31 = vector.broadcast %cst_24 : f32 to vector<128x128xf32>
    %32 = arith.maximumf %30, %31 : vector<128x128xf32>
    %33 = tpu.iota {dimensions = array<i32: 0>} : vector<128x1xi32>
    %34 = arith.index_cast %arg0 : i32 to index
    %35 = memref.load %arg1[%34] : memref<2xi32, #tpu.memory_space<smem>>
    %36 = vector.broadcast %35 : i32 to vector<128x1xi32>
    %37 = arith.cmpi slt, %33, %36 : vector<128x1xi32>
    %cst_25 = arith.constant 0.000000e+00 : f32
    %38 = vector.shape_cast %37 : vector<128x1xi1> to vector<128x1xi1>
    %39 = vector.broadcast %38 : vector<128x1xi1> to vector<128x128xi1>
    %40 = vector.broadcast %cst_25 : f32 to vector<128x128xf32>
    %41 = arith.select %39, %32, %40 : vector<128x128xi1>, vector<128x128xf32>
    %c0_26 = arith.constant 0 : index
    %c0_27 = arith.constant 0 : index
    %c0_28 = arith.constant 0 : index
    %42 = vector.load %arg10[%c0_26, %c0_27, %c0_28] : memref<1x128x128xf32, #tpu.memory_space<vmem>>, vector<1x128x128xf32>
    %43 = vector.shape_cast %42 : vector<1x128x128xf32> to vector<128x128xf32>
    %44 = vector.shape_cast %41 : vector<128x128xf32> to vector<1x128x128xf32>
    tpu.vector_store %arg10[%c0_26, %c0_27, %c0_28], %44 {strides = array<i32>} : memref<1x128x128xf32, #tpu.memory_space<vmem>>, vector<1x128x128xf32>,
    return
  }
  func.func @transform_0(%arg0: i32, %arg1: memref<2xi32, #tpu.memory_space<smem>>) -> (i32, i32, i32) {
    %c0_i32 = arith.constant 0 : i32
    %c0_i32_0 = arith.constant 0 : i32
    %c0_i32_1 = arith.constant 0 : i32
    return %arg0, %c0_i32, %c0_i32_0 : i32, i32, i32
  }
  func.func @transform_1(%arg0: i32, %arg1: memref<2xi32, #tpu.memory_space<smem>>) -> (i32, i32, i32) {
    %c0_i32 = arith.constant 0 : i32
    %c0_i32_0 = arith.constant 0 : i32
    %c0_i32_1 = arith.constant 0 : i32
    return %arg0, %c0_i32, %c0_i32_0 : i32, i32, i32
  }
  func.func @transform_2(%arg0: i32, %arg1: memref<2xi32, #tpu.memory_space<smem>>) -> (i32, i32) {
    %c0_i32 = arith.constant 0 : i32
    %c0_i32_0 = arith.constant 0 : i32
    %c0_i32_1 = arith.constant 0 : i32
    return %c0_i32, %c0_i32_0 : i32, i32
  }
  func.func @transform_3(%arg0: i32, %arg1: memref<2xi32, #tpu.memory_space<smem>>) -> (i32, i32) {
    %c0_i32 = arith.constant 0 : i32
    %c0_i32_0 = arith.constant 0 : i32
    %c0_i32_1 = arith.constant 0 : i32
    return %c0_i32, %c0_i32_0 : i32, i32
  }
  func.func @transform_4(%arg0: i32, %arg1: memref<2xi32, #tpu.memory_space<smem>>) -> (i32, i32) {
    %c0_i32 = arith.constant 0 : i32
    %c0_i32_0 = arith.constant 0 : i32
    %c0_i32_1 = arith.constant 0 : i32
    return %c0_i32, %c0_i32_0 : i32, i32
  }
  func.func @transform_5(%arg0: i32, %arg1: memref<2xi32, #tpu.memory_space<smem>>) -> (i32, i32) {
    %c0_i32 = arith.constant 0 : i32
    %c0_i32_0 = arith.constant 0 : i32
    %c0_i32_1 = arith.constant 0 : i32
    return %c0_i32, %c0_i32_0 : i32, i32
  }
  func.func @transform_6(%arg0: i32, %arg1: memref<2xi32, #tpu.memory_space<smem>>) -> (i32, i32) {
    %c0_i32 = arith.constant 0 : i32
    %c0_i32_0 = arith.constant 0 : i32
    %c0_i32_1 = arith.constant 0 : i32
    return %c0_i32, %c0_i32_0 : i32, i32
  }
  func.func @transform_7(%arg0: i32, %arg1: memref<2xi32, #tpu.memory_space<smem>>) -> (i32, i32) {
    %c0_i32 = arith.constant 0 : i32
    %c0_i32_0 = arith.constant 0 : i32
    %c0_i32_1 = arith.constant 0 : i32
    return %c0_i32, %c0_i32_0 : i32, i32
  }
  func.func @transform_8(%arg0: i32, %arg1: memref<2xi32, #tpu.memory_space<smem>>) -> (i32, i32, i32) {
    %c0_i32 = arith.constant 0 : i32
    %c0_i32_0 = arith.constant 0 : i32
    %c0_i32_1 = arith.constant 0 : i32
    return %arg0, %c0_i32, %c0_i32_0 : i32, i32, i32
  }
}

</mosaic_0001>

<llo_original>
// kernel: gnn_encoder_forward.1
$region0: #{gnn_encoder_forward.1}
  #allocation0 [shape = 'u32[]', space=smem, size = 0x4, offset = 0x4, fixed_abs, tag = 'smem constant byte address 0x4 - core index']
  #allocation1 [shape = 'u32[144,128]{1,0:T(1,128)}', space=vmem, size = 0x12000, scoped, tag = 'internal scratch']
  #allocation2 [shape = 's32[1]{0}', space=sflag, size = 0x4, scoped, tag = 'scoped memory for gnn_encoder_forward.1']
  #allocation3 [shape = 'u8[512]{0}', space=smem, size = 0x200, scoped, tag = 'prefetched SMEM operand 0']
  %s0 = inlined_call_operand.hbm [shape: s32[2], index: 0, kind: input, shape index: {}]
  %s1 = inlined_call_operand.hbm [shape: bf16[2,128,128], index: 1, kind: input, shape index: {}]
  %s2 = inlined_call_operand.hbm [shape: bf16[2,128,128], index: 2, kind: input, shape index: {}]
  %s3 = inlined_call_operand.hbm [shape: bf16[128,128], index: 3, kind: input, shape index: {}]
  %s4 = inlined_call_operand.vmem [shape: f32[1,128], index: 4, kind: input, shape index: {}]
  %s5 = inlined_call_operand.hbm [shape: bf16[128,128], index: 5, kind: input, shape index: {}]
  %s6 = inlined_call_operand.vmem [shape: f32[1,128], index: 6, kind: input, shape index: {}]
  %s7 = inlined_call_operand.hbm [shape: bf16[128,128], index: 7, kind: input, shape index: {}]
  %s8 = inlined_call_operand.vmem [shape: f32[1,128], index: 8, kind: input, shape index: {}]
  %s9 = inlined_call_operand.hbm [shape: f32[2,128,128], index: 9, kind: output, shape index: {}]
  %s10 = sld [smem:[#allocation0]]
  $region85: #{gnn_encoder_forward.1} parent=0
    _
  %s12 = ssub.s32 1, %s10
  %s13 = scalar_select 0, %s12, %s10
  %15 = dma.hbm_to_smem %s0, 16, [#allocation3], [#allocation2]
  %16 = dma.done [#allocation2], 16
  %17 = sfence
  $region1: #{gnn_encoder_forward.1} parent=0
    #allocation4 [shape = 'u8[65536]{0}', space=vmem, size = 0x10000, scoped, tag = 'input window, operand 1']
    #allocation5 [shape = 's32[2]{0}', space=sflag, size = 0x8, scoped, tag = 'scoped memory for gnn_encoder_forward.1']
    #allocation6 [shape = 's32[2]{0}', space=sflag, size = 0x8, scoped, tag = 'scoped memory for gnn_encoder_forward.1']
    #allocation7 [shape = 'u8[65536]{0}', space=vmem, size = 0x10000, scoped, tag = 'input window, operand 2']
    #allocation8 [shape = 's32[2]{0}', space=sflag, size = 0x8, scoped, tag = 'scoped memory for gnn_encoder_forward.1']
    #allocation9 [shape = 'u8[32768]{0}', space=vmem, size = 0x8000, scoped, tag = 'input window, operand 3, single buffered']
    #allocation10 [shape = 'u8[32768]{0}', space=vmem, size = 0x8000, scoped, tag = 'input window, operand 5, single buffered']
    #allocation11 [shape = 's32[1]{0}', space=sflag, size = 0x4, scoped, tag = 'scoped memory for gnn_encoder_forward.1']
    #allocation12 [shape = 'u8[32768]{0}', space=vmem, size = 0x8000, scoped, tag = 'input window, operand 7, single buffered']
    #allocation13 [shape = 'u8[131072]{0}', space=vmem, size = 0x20000, scoped, tag = 'output window, operand 0']
    %18 = vsyncpa [#allocation5], 0
    %s19 = scalar_lea.sflag [#allocation5], 1
    %20 = vsyncpa %s19, 0
    %21 = vsyncpa [#allocation8], 0
    %s22 = scalar_lea.sflag [#allocation8], 1
    %23 = vsyncpa %s22, 0
    %24 = vsyncpa [#allocation11], 0
    %25 = vsyncpa [#allocation6], 0
    %s26 = scalar_lea.sflag [#allocation6], 1
    %27 = vsyncpa %s26, 0
    loop: start=0, step=1, limit=4
    $region2: #{gnn_encoder_forward.1} parent=1 // loop_pre_header
      _
    $region3: #{gnn_encoder_forward.1} parent=1 // loop_header
      %s29 = sphi 0, %s33
      %p30 = scmp.ge.s32.totalorder %s29, 4
      %s39 = sphi 0, %s41
      %s42 = sphi 0, %s39
      %s43 = sphi 0, %s42
      %s59 = sphi 0, %s43
      %s65 = sphi 0, %s67
      %s68 = sphi 0, %s65
      %s69 = sphi 0, %s68
      %s85 = sphi 0, %s69
      %s89 = sphi 0, %s89
      %s91 = sphi 0, %s89
      %s92 = sphi 0, %s91
      %s106 = sphi 0, %s92
      %s110 = sphi 0, %s110
      %s112 = sphi 0, %s110
      %s113 = sphi 0, %s112
      %s127 = sphi 0, %s113
      %s131 = sphi 0, %s131
      %s133 = sphi 0, %s131
      %s134 = sphi 0, %s133
      %s148 = sphi 0, %s134
      %s152 = sphi 0, %s152
      %s154 = sphi 0, %s152
      %s155 = sphi 0, %s154
      %s169 = sphi 0, %s155
      %s173 = sphi 0, %s173
      %s175 = sphi 0, %s173
      %s176 = sphi 0, %s175
      %s190 = sphi 0, %s176
      %s194 = sphi 0, %s194
      %s196 = sphi 0, %s194
      %s197 = sphi 0, %s196
      %s211 = sphi 0, %s197
      %s217 = sphi 0, %s219
      %s220 = sphi 0, %s217
      %s221 = sphi 0, %s220
      %s237 = sphi 0, %s221
    $region4: #{gnn_encoder_forward.1} parent=1 // loop_header_branch
      %32 = sbr.rel (%p30) target = $region8
    $region5: #{gnn_encoder_forward.1} parent=1 // loop_body
      %s34 = ssub.s32 %s29, 1
      %s35 = ssub.s32 %s29, 2
      %s36 = sadd.s32 %s29, 1
      %s37 = ssub.s32 %s29, %s36
      %p38 = scmp.eq.s32.totalorder %s37, 0
      %s40 = sadd.s32 %s39, 1
      %s41 = scalar_select %p38, %s39, %s40
      %p44 = pneg %p38
      %p45 = scmp.eq.s32.totalorder %s29, 1
      %p46 = por %p44, %p45
      %p47 = scmp.ne.s32.totalorder %s39, %s42
      %p48 = scmp.eq.s32.totalorder %s29, 0
      %p49 = por %p47, %p48
      %p50 = scmp.ne.s32.totalorder %s39, %s42
      %p51 = scmp.eq.s32.totalorder %s34, 1
      %p52 = por %p50, %p51
      %p53 = scmp.ne.s32.totalorder %s42, %s43
      %p54 = scmp.eq.s32.totalorder %s34, 0
      %p55 = por %p53, %p54
      %p56 = scmp.ne.s32.totalorder %s42, %s43
      %p57 = scmp.eq.s32.totalorder %s35, 1
      %p58 = por %p56, %p57
      %p60 = scmp.ne.s32.totalorder %s43, %s59
      %p61 = scmp.eq.s32.totalorder %s35, 0
      %p62 = por %p60, %p61
      %s63 = ssub.s32 %s29, %s36
      %p64 = scmp.eq.s32.totalorder %s63, 0
      %s66 = sadd.s32 %s65, 1
      %s67 = scalar_select %p64, %s65, %s66
      %p70 = pneg %p64
      %p71 = scmp.eq.s32.totalorder %s29, 1
      %p72 = por %p70, %p71
      %p73 = scmp.ne.s32.totalorder %s65, %s68
      %p74 = scmp.eq.s32.totalorder %s29, 0
      %p75 = por %p73, %p74
      %p76 = scmp.ne.s32.totalorder %s65, %s68
      %p77 = scmp.eq.s32.totalorder %s34, 1
      %p78 = por %p76, %p77
      %p79 = scmp.ne.s32.totalorder %s68, %s69
      %p80 = scmp.eq.s32.totalorder %s34, 0
      %p81 = por %p79, %p80
      %p82 = scmp.ne.s32.totalorder %s68, %s69
      %p83 = scmp.eq.s32.totalorder %s35, 1
      %p84 = por %p82, %p83
      %p86 = scmp.ne.s32.totalorder %s69, %s85
      %p87 = scmp.eq.s32.totalorder %s35, 0
      %p88 = por %p86, %p87
      %s90 = sadd.s32 %s89, 1
      %p93 = scmp.eq.s32.totalorder %s29, 1
      %p94 = scmp.ne.s32.totalorder %s89, %s91
      %p95 = scmp.eq.s32.totalorder %s29, 0
      %p96 = por %p94, %p95
      %p97 = scmp.ne.s32.totalorder %s89, %s91
      %p98 = scmp.eq.s32.totalorder %s34, 1
      %p99 = por %p97, %p98
      %p100 = scmp.ne.s32.totalorder %s91, %s92
      %p101 = scmp.eq.s32.totalorder %s34, 0
      %p102 = por %p100, %p101
      %p103 = scmp.ne.s32.totalorder %s91, %s92
      %p104 = scmp.eq.s32.totalorder %s35, 1
      %p105 = por %p103, %p104
      %p107 = scmp.ne.s32.totalorder %s92, %s106
      %p108 = scmp.eq.s32.totalorder %s35, 0
      %p109 = por %p107, %p108
      %s111 = sadd.s32 %s110, 1
      %p114 = scmp.eq.s32.totalorder %s29, 1
      %p115 = scmp.ne.s32.totalorder %s110, %s112
      %p116 = scmp.eq.s32.totalorder %s29, 0
      %p117 = por %p115, %p116
      %p118 = scmp.ne.s32.totalorder %s110, %s112
      %p119 = scmp.eq.s32.totalorder %s34, 1
      %p120 = por %p118, %p119
      %p121 = scmp.ne.s32.totalorder %s112, %s113
      %p122 = scmp.eq.s32.totalorder %s34, 0
      %p123 = por %p121, %p122
      %p124 = scmp.ne.s32.totalorder %s112, %s113
      %p125 = scmp.eq.s32.totalorder %s35, 1
      %p126 = por %p124, %p125
      %p128 = scmp.ne.s32.totalorder %s113, %s127
      %p129 = scmp.eq.s32.totalorder %s35, 0
      %p130 = por %p128, %p129
      %s132 = sadd.s32 %s131, 1
      %p135 = scmp.eq.s32.totalorder %s29, 1
      %p136 = scmp.ne.s32.totalorder %s131, %s133
      %p137 = scmp.eq.s32.totalorder %s29, 0
      %p138 = por %p136, %p137
      %p139 = scmp.ne.s32.totalorder %s131, %s133
      %p140 = scmp.eq.s32.totalorder %s34, 1
      %p141 = por %p139, %p140
      %p142 = scmp.ne.s32.totalorder %s133, %s134
      %p143 = scmp.eq.s32.totalorder %s34, 0
      %p144 = por %p142, %p143
      %p145 = scmp.ne.s32.totalorder %s133, %s134
      %p146 = scmp.eq.s32.totalorder %s35, 1
      %p147 = por %p145, %p146
      %p149 = scmp.ne.s32.totalorder %s134, %s148
      %p150 = scmp.eq.s32.totalorder %s35, 0
      %p151 = por %p149, %p150
      %s153 = sadd.s32 %s152, 1
      %p156 = scmp.eq.s32.totalorder %s29, 1
      %p157 = scmp.ne.s32.totalorder %s152, %s154
      %p158 = scmp.eq.s32.totalorder %s29, 0
      %p159 = por %p157, %p158
      %p160 = scmp.ne.s32.totalorder %s152, %s154
      %p161 = scmp.eq.s32.totalorder %s34, 1
      %p162 = por %p160, %p161
      %p163 = scmp.ne.s32.totalorder %s154, %s155
      %p164 = scmp.eq.s32.totalorder %s34, 0
      %p165 = por %p163, %p164
      %p166 = scmp.ne.s32.totalorder %s154, %s155
      %p167 = scmp.eq.s32.totalorder %s35, 1
      %p168 = por %p166, %p167
      %p170 = scmp.ne.s32.totalorder %s155, %s169
      %p171 = scmp.eq.s32.totalorder %s35, 0
      %p172 = por %p170, %p171
      %s174 = sadd.s32 %s173, 1
      %p177 = scmp.eq.s32.totalorder %s29, 1
      %p178 = scmp.ne.s32.totalorder %s173, %s175
      %p179 = scmp.eq.s32.totalorder %s29, 0
      %p180 = por %p178, %p179
      %p181 = scmp.ne.s32.totalorder %s173, %s175
      %p182 = scmp.eq.s32.totalorder %s34, 1
      %p183 = por %p181, %p182
      %p184 = scmp.ne.s32.totalorder %s175, %s176
      %p185 = scmp.eq.s32.totalorder %s34, 0
      %p186 = por %p184, %p185
      %p187 = scmp.ne.s32.totalorder %s175, %s176
      %p188 = scmp.eq.s32.totalorder %s35, 1
      %p189 = por %p187, %p188
      %p191 = scmp.ne.s32.totalorder %s176, %s190
      %p192 = scmp.eq.s32.totalorder %s35, 0
      %p193 = por %p191, %p192
      %s195 = sadd.s32 %s194, 1
      %p198 = scmp.eq.s32.totalorder %s29, 1
      %p199 = scmp.ne.s32.totalorder %s194, %s196
      %p200 = scmp.eq.s32.totalorder %s29, 0
      %p201 = por %p199, %p200
      %p202 = scmp.ne.s32.totalorder %s194, %s196
      %p203 = scmp.eq.s32.totalorder %s34, 1
      %p204 = por %p202, %p203
      %p205 = scmp.ne.s32.totalorder %s196, %s197
      %p206 = scmp.eq.s32.totalorder %s34, 0
      %p207 = por %p205, %p206
      %p208 = scmp.ne.s32.totalorder %s196, %s197
      %p209 = scmp.eq.s32.totalorder %s35, 1
      %p210 = por %p208, %p209
      %p212 = scmp.ne.s32.totalorder %s197, %s211
      %p213 = scmp.eq.s32.totalorder %s35, 0
      %p214 = por %p212, %p213
      %s215 = ssub.s32 %s29, %s36
      %p216 = scmp.eq.s32.totalorder %s215, 0
      %s218 = sadd.s32 %s217, 1
      %s219 = scalar_select %p216, %s217, %s218
      %p222 = pneg %p216
      %p223 = scmp.eq.s32.totalorder %s29, 1
      %p224 = por %p222, %p223
      %p225 = scmp.ne.s32.totalorder %s217, %s220
      %p226 = scmp.eq.s32.totalorder %s29, 0
      %p227 = por %p225, %p226
      %p228 = scmp.ne.s32.totalorder %s217, %s220
      %p229 = scmp.eq.s32.totalorder %s34, 1
      %p230 = por %p228, %p229
      %p231 = scmp.ne.s32.totalorder %s220, %s221
      %p232 = scmp.eq.s32.totalorder %s34, 0
      %p233 = por %p231, %p232
      %p234 = scmp.ne.s32.totalorder %s220, %s221
      %p235 = scmp.eq.s32.totalorder %s35, 1
      %p236 = por %p234, %p235
      %p238 = scmp.ne.s32.totalorder %s221, %s237
      %p239 = scmp.eq.s32.totalorder %s35, 0
      %p240 = por %p238, %p239
      %p241 = scmp.le.s32.totalorder 1, %s29
      %p242 = scmp.lt.s32.totalorder %s29, 3
      %p243 = pnand %p241, %p242
      %p244 = pneg %p243
      // Predicated region
      $region9: #{gnn_encoder_forward.1} parent=5 // pred_check
        _
      $region10: #{gnn_encoder_forward.1} parent=5 // pred_check_branch
        %246 = sbr.rel (%p243) target = $region12
      $region11: #{gnn_encoder_forward.1} parent=5 // pred_region
        %s247 = ssub.s32 %s29, 1
        // Predicated region
        $region13: #{gnn_encoder_forward.1} parent=11 // pred_check
          %p248 = pneg %p102
        $region14: #{gnn_encoder_forward.1} parent=11 // pred_check_branch
          %250 = sbr.rel (%p248) target = $region16
        $region15: #{gnn_encoder_forward.1} parent=11 // pred_region
          %s252 = ssub.s32 1024, 1024
          %253 = vsyncadd [#allocation8], %s252
          %s254 = sshll.u32 [#allocation9], 4
          %s255 = int_to_ptr.vmem [resolvable:$true] %s254
          %260 = dma.hbm_to_vmem [thread:$0]  %s3, 1024, %s255, [#allocation8], 64, 64, 4
        $region16: #{gnn_encoder_forward.1} parent=11 // pred_fallthru
          _
        // Predicated region
        $region17: #{gnn_encoder_forward.1} parent=11 // pred_check
          %p261 = pneg %p123
        $region18: #{gnn_encoder_forward.1} parent=11 // pred_check_branch
          %263 = sbr.rel (%p261) target = $region20
        $region19: #{gnn_encoder_forward.1} parent=11 // pred_region
          _
        $region20: #{gnn_encoder_forward.1} parent=11 // pred_fallthru
          _
        // Predicated region
        $region21: #{gnn_encoder_forward.1} parent=11 // pred_check
          %p264 = pneg %p144
        $region22: #{gnn_encoder_forward.1} parent=11 // pred_check_branch
          %266 = sbr.rel (%p264) target = $region24
        $region23: #{gnn_encoder_forward.1} parent=11 // pred_region
          %s268 = ssub.s32 1024, 1024
          %269 = vsyncadd [#allocation11], %s268
          %s270 = sshll.u32 [#allocation10], 4
          %s271 = int_to_ptr.vmem [resolvable:$true] %s270
          %276 = dma.hbm_to_vmem [thread:$0]  %s5, 1024, %s271, [#allocation11], 64, 64, 4
        $region24: #{gnn_encoder_forward.1} parent=11 // pred_fallthru
          _
        // Predicated region
        $region25: #{gnn_encoder_forward.1} parent=11 // pred_check
          %p277 = pneg %p165
        $region26: #{gnn_encoder_forward.1} parent=11 // pred_check_branch
          %279 = sbr.rel (%p277) target = $region28
        $region27: #{gnn_encoder_forward.1} parent=11 // pred_region
          _
        $region28: #{gnn_encoder_forward.1} parent=11 // pred_fallthru
          _
        // Predicated region
        $region29: #{gnn_encoder_forward.1} parent=11 // pred_check
          %p280 = pneg %p186
        $region30: #{gnn_encoder_forward.1} parent=11 // pred_check_branch
          %282 = sbr.rel (%p280) target = $region32
        $region31: #{gnn_encoder_forward.1} parent=11 // pred_region
          %s284 = ssub.s32 1024, 1024
          %285 = vsyncadd [#allocation11], %s284
          %s286 = sshll.u32 [#allocation12], 4
          %s287 = int_to_ptr.vmem [resolvable:$true] %s286
          %292 = dma.hbm_to_vmem [thread:$0]  %s7, 1024, %s287, [#allocation11], 64, 64, 4
        $region32: #{gnn_encoder_forward.1} parent=11 // pred_fallthru
          _
        // Predicated region
        $region33: #{gnn_encoder_forward.1} parent=11 // pred_check
          %p293 = pneg %p207
        $region34: #{gnn_encoder_forward.1} parent=11 // pred_check_branch
          %295 = sbr.rel (%p293) target = $region36
        $region35: #{gnn_encoder_forward.1} parent=11 // pred_region
          _
        $region36: #{gnn_encoder_forward.1} parent=11 // pred_fallthru
          _
      $region12: #{gnn_encoder_forward.1} parent=5 // pred_fallthru
        _
      %p296 = scmp.lt.s32.totalorder %s29, 2
      // Predicated region
      $region37: #{gnn_encoder_forward.1} parent=5 // pred_check
        %p297 = pneg %p296
      $region38: #{gnn_encoder_forward.1} parent=5 // pred_check_branch
        %299 = sbr.rel (%p297) target = $region40
      $region39: #{gnn_encoder_forward.1} parent=5 // pred_region
        // Predicated region
        $region41: #{gnn_encoder_forward.1} parent=39 // pred_check
          %p300 = pneg %p49
        $region42: #{gnn_encoder_forward.1} parent=39 // pred_check_branch
          %302 = sbr.rel (%p300) target = $region44
        $region43: #{gnn_encoder_forward.1} parent=39 // pred_region
          %s303 = sand.u32 %s39, 1
          %s304 = scalar_lea.sflag [#allocation5], %s303
          %s305 = sand.u32 %s39, 1
          %s306 = smul.addr %s305, 64
          %s307 = scalar_lea.vmem [#allocation4], %s306
          %s309 = ssub.s32 1024, 1024
          %310 = vsyncadd %s304, %s309
          %s311 = smul.addr %s29, 16
          %s312 = smul.addr %s311, 64
          %s313 = scalar_lea.hbm %s1, %s312
          %s314 = sshll.u32 %s307, 4
          %s315 = int_to_ptr.vmem [resolvable:$true] %s314
          %320 = dma.hbm_to_vmem [thread:$0]  %s313, 1024, %s315, %s304, 64, 64, 4
        $region44: #{gnn_encoder_forward.1} parent=39 // pred_fallthru
          _
        // Predicated region
        $region45: #{gnn_encoder_forward.1} parent=39 // pred_check
          %p321 = pneg %p75
        $region46: #{gnn_encoder_forward.1} parent=39 // pred_check_branch
          %323 = sbr.rel (%p321) target = $region48
        $region47: #{gnn_encoder_forward.1} parent=39 // pred_region
          %s324 = sand.u32 %s29, 1
          %s325 = scalar_lea.sflag [#allocation8], %s324
          %s326 = sand.u32 %s65, 1
          %s327 = smul.addr %s326, 64
          %s328 = scalar_lea.vmem [#allocation7], %s327
          %s330 = ssub.s32 1024, 1024
          %331 = vsyncadd %s325, %s330
          %s332 = smul.addr %s29, 16
          %s333 = smul.addr %s332, 64
          %s334 = scalar_lea.hbm %s2, %s333
          %s335 = sshll.u32 %s328, 4
          %s336 = int_to_ptr.vmem [resolvable:$true] %s335
          %341 = dma.hbm_to_vmem [thread:$0]  %s334, 1024, %s336, %s325, 64, 64, 4
        $region48: #{gnn_encoder_forward.1} parent=39 // pred_fallthru
          _
      $region40: #{gnn_encoder_forward.1} parent=5 // pred_fallthru
        _
      %p342 = scmp.le.s32.totalorder 1, %s29
      %p343 = scmp.lt.s32.totalorder %s29, 3
      %p344 = pnand %p342, %p343
      %p345 = pneg %p344
      // Predicated region
      $region49: #{gnn_encoder_forward.1} parent=5 // pred_check
        _
      $region50: #{gnn_encoder_forward.1} parent=5 // pred_check_branch
        %347 = sbr.rel (%p344) target = $region52
      $region51: #{gnn_encoder_forward.1} parent=5 // pred_region
        %s348 = ssub.s32 %s29, 1
        %s349 = sand.u32 %s42, 1
        %s350 = scalar_lea.sflag [#allocation5], %s349
        %s351 = sand.u32 %s42, 1
        %s352 = smul.addr %s351, 64
        %s353 = scalar_lea.vmem [#allocation4], %s352
        // Predicated region
        $region53: #{gnn_encoder_forward.1} parent=51 // pred_check
          %p354 = pneg %p55
        $region54: #{gnn_encoder_forward.1} parent=51 // pred_check_branch
          %356 = sbr.rel (%p354) target = $region56
        $region55: #{gnn_encoder_forward.1} parent=51 // pred_region
          %357 = dma.done %s350, 1024
        $region56: #{gnn_encoder_forward.1} parent=51 // pred_fallthru
          _
        %s358 = sand.u32 %s34, 1
        %s359 = scalar_lea.sflag [#allocation8], %s358
        %s360 = sand.u32 %s68, 1
        %s361 = smul.addr %s360, 64
        %s362 = scalar_lea.vmem [#allocation7], %s361
        // Predicated region
        $region57: #{gnn_encoder_forward.1} parent=51 // pred_check
          %p363 = pneg %p81
        $region58: #{gnn_encoder_forward.1} parent=51 // pred_check_branch
          %365 = sbr.rel (%p363) target = $region60
        $region59: #{gnn_encoder_forward.1} parent=51 // pred_region
          %366 = dma.done %s359, 1024
        $region60: #{gnn_encoder_forward.1} parent=51 // pred_fallthru
          _
        // Predicated region
        $region61: #{gnn_encoder_forward.1} parent=51 // pred_check
          %p367 = pneg %p102
        $region62: #{gnn_encoder_forward.1} parent=51 // pred_check_branch
          %369 = sbr.rel (%p367) target = $region64
        $region63: #{gnn_encoder_forward.1} parent=51 // pred_region
          %370 = dma.done [#allocation8], 1024
        $region64: #{gnn_encoder_forward.1} parent=51 // pred_fallthru
          _
        // Predicated region
        $region65: #{gnn_encoder_forward.1} parent=51 // pred_check
          %p371 = pneg %p144
        $region66: #{gnn_encoder_forward.1} parent=51 // pred_check_branch
          %373 = sbr.rel (%p371) target = $region68
        $region67: #{gnn_encoder_forward.1} parent=51 // pred_region
          %374 = dma.done [#allocation11], 1024
        $region68: #{gnn_encoder_forward.1} parent=51 // pred_fallthru
          _
        // Predicated region
        $region69: #{gnn_encoder_forward.1} parent=51 // pred_check
          %p375 = pneg %p186
        $region70: #{gnn_encoder_forward.1} parent=51 // pred_check_branch
          %377 = sbr.rel (%p375) target = $region72
        $region71: #{gnn_encoder_forward.1} parent=51 // pred_region
          %378 = dma.done [#allocation11], 1024
        $region72: #{gnn_encoder_forward.1} parent=51 // pred_fallthru
          _
        %s379 = sand.u32 %s42, 1
        %s380 = scalar_lea.sflag [#allocation5], %s379
        %s381 = sand.u32 %s42, 1
        %s382 = smul.addr %s381, 64
        %s383 = scalar_lea.vmem [#allocation4], %s382
        %p384 = pneg %p55
        %p385 = pneg %p52
        %s386 = sand.u32 %s34, 1
        %s387 = scalar_lea.sflag [#allocation8], %s386
        %s388 = sand.u32 %s68, 1
        %s389 = smul.addr %s388, 64
        %s390 = scalar_lea.vmem [#allocation7], %s389
        %p391 = pneg %p81
        %p392 = pneg %p78
        %p393 = pneg %p102
        %p394 = pneg %p99
        %p395 = pneg %p123
        %p396 = pneg %p120
        %p397 = pneg %p144
        %p398 = pneg %p141
        %p399 = pneg %p165
        %p400 = pneg %p162
        %p401 = pneg %p186
        %p402 = pneg %p183
        %p403 = pneg %p207
        %p404 = pneg %p204
        %p405 = pneg %p233
        %p406 = pneg %p230
        %s407 = sand.u32 %s220, 1
        %s408 = scalar_lea.sflag [#allocation6], %s407
        %s409 = sand.u32 %s220, 1
        %s410 = smul.addr %s409, 128
        %s411 = scalar_lea.vmem [#allocation13], %s410
        %v413 = vld [vmem:[%s353] sm:$0xf]
        %v414 = vld [vmem:[%s353 + $0x4] sm:$0xf]
        %v415 = vld [vmem:[%s353 + $0x8] sm:$0xf]
        %v416 = vld [vmem:[%s353 + $0xc] sm:$0xf]
        %v417 = vld [vmem:[%s353 + $0x10] sm:$0xf]
        %v418 = vld [vmem:[%s353 + $0x14] sm:$0xf]
        %v419 = vld [vmem:[%s353 + $0x18] sm:$0xf]
        %v420 = vld [vmem:[%s353 + $0x1c] sm:$0xf]
        %v421 = vld [vmem:[%s353 + $0x20] sm:$0xf]
        %v422 = vld [vmem:[%s353 + $0x24] sm:$0xf]
        %v423 = vld [vmem:[%s353 + $0x28] sm:$0xf]
        %v424 = vld [vmem:[%s353 + $0x2c] sm:$0xf]
        %v425 = vld [vmem:[%s353 + $0x30] sm:$0xf]
        %v426 = vld [vmem:[%s353 + $0x34] sm:$0xf]
        %v427 = vld [vmem:[%s353 + $0x38] sm:$0xf]
        %v428 = vld [vmem:[%s353 + $0x3c] sm:$0xf]
        %v429 = vld [vmem:[%s362] sm:$0xf]
        %v430 = vld [vmem:[%s362 + $0x4] sm:$0xf]
        %v431 = vld [vmem:[%s362 + $0x8] sm:$0xf]
        %v432 = vld [vmem:[%s362 + $0xc] sm:$0xf]
        %v433 = vld [vmem:[%s362 + $0x10] sm:$0xf]
        %v434 = vld [vmem:[%s362 + $0x14] sm:$0xf]
        %v435 = vld [vmem:[%s362 + $0x18] sm:$0xf]
        %v436 = vld [vmem:[%s362 + $0x1c] sm:$0xf]
        %v437 = vld [vmem:[%s362 + $0x20] sm:$0xf]
        %v438 = vld [vmem:[%s362 + $0x24] sm:$0xf]
        %v439 = vld [vmem:[%s362 + $0x28] sm:$0xf]
        %v440 = vld [vmem:[%s362 + $0x2c] sm:$0xf]
        %v441 = vld [vmem:[%s362 + $0x30] sm:$0xf]
        %v442 = vld [vmem:[%s362 + $0x34] sm:$0xf]
        %v443 = vld [vmem:[%s362 + $0x38] sm:$0xf]
        %v444 = vld [vmem:[%s362 + $0x3c] sm:$0xf]
        %v445 = vld [vmem:[#allocation9] sm:$0xf]
        %v446 = vld [vmem:[#allocation9 + $0x4] sm:$0xf]
        %v447 = vld [vmem:[#allocation9 + $0x8] sm:$0xf]
        %v448 = vld [vmem:[#allocation9 + $0xc] sm:$0xf]
        %v449 = vld [vmem:[#allocation9 + $0x10] sm:$0xf]
        %v450 = vld [vmem:[#allocation9 + $0x14] sm:$0xf]
        %v451 = vld [vmem:[#allocation9 + $0x18] sm:$0xf]
        %v452 = vld [vmem:[#allocation9 + $0x1c] sm:$0xf]
        %v453 = vld [vmem:[#allocation9 + $0x20] sm:$0xf]
        %v454 = vld [vmem:[#allocation9 + $0x24] sm:$0xf]
        %v455 = vld [vmem:[#allocation9 + $0x28] sm:$0xf]
        %v456 = vld [vmem:[#allocation9 + $0x2c] sm:$0xf]
        %v457 = vld [vmem:[#allocation9 + $0x30] sm:$0xf]
        %v458 = vld [vmem:[#allocation9 + $0x34] sm:$0xf]
        %v459 = vld [vmem:[#allocation9 + $0x38] sm:$0xf]
        %v460 = vld [vmem:[#allocation9 + $0x3c] sm:$0xf]
        %v477 = vunpack.c.l.b16 %v429
        %v478 = vunpack.c.l.b16 %v430
        %v479 = vunpack.c.l.b16 %v431
        %v480 = vunpack.c.l.b16 %v432
        %v481 = vunpack.c.l.b16 %v433
        %v482 = vunpack.c.l.b16 %v434
        %v483 = vunpack.c.l.b16 %v435
        %v484 = vunpack.c.l.b16 %v436
        %v485 = vunpack.c.l.b16 %v437
        %v486 = vunpack.c.l.b16 %v438
        %v487 = vunpack.c.l.b16 %v439
        %v488 = vunpack.c.l.b16 %v440
        %v489 = vunpack.c.l.b16 %v441
        %v490 = vunpack.c.l.b16 %v442
        %v491 = vunpack.c.l.b16 %v443
        %v492 = vunpack.c.l.b16 %v444
        %v493 = vpack.c.b16 %v478, %v477
        %v494 = vpack.c.b16 %v480, %v479
        %v495 = vpack.c.b16 %v482, %v481
        %v496 = vpack.c.b16 %v484, %v483
        %v497 = vpack.c.b16 %v486, %v485
        %v498 = vpack.c.b16 %v488, %v487
        %v499 = vpack.c.b16 %v490, %v489
        %v500 = vpack.c.b16 %v492, %v491
        %v525 = vunpack.c.l.b16 %v445
        %v526 = vunpack.c.l.b16 %v446
        %v527 = vunpack.c.l.b16 %v447
        %v528 = vunpack.c.l.b16 %v448
        %v529 = vunpack.c.l.b16 %v449
        %v530 = vunpack.c.l.b16 %v450
        %v531 = vunpack.c.l.b16 %v451
        %v532 = vunpack.c.l.b16 %v452
        %v533 = vunpack.c.l.b16 %v453
        %v534 = vunpack.c.l.b16 %v454
        %v535 = vunpack.c.l.b16 %v455
        %v536 = vunpack.c.l.b16 %v456
        %v537 = vunpack.c.l.b16 %v457
        %v538 = vunpack.c.l.b16 %v458
        %v539 = vunpack.c.l.b16 %v459
        %v540 = vunpack.c.l.b16 %v460
        %v541 = vpack.c.b16 %v526, %v525
        %v542 = vpack.c.b16 %v528, %v527
        %v543 = vpack.c.b16 %v530, %v529
        %v544 = vpack.c.b16 %v532, %v531
        %v545 = vpack.c.b16 %v534, %v533
        %v546 = vpack.c.b16 %v536, %v535
        %v547 = vpack.c.b16 %v538, %v537
        %v548 = vpack.c.b16 %v540, %v539
        %557 = vmatprep.subr.bf16.mxu0 0
        %558 = vmatpush1.bf16.msra.mxu0 %v541
        %559 = vmatprep.subr.bf16.mxu0 0
        %560 = vmatpush1.bf16.msra.mxu0 %v542
        %561 = vmatprep.subr.bf16.mxu0 0
        %562 = vmatpush1.bf16.msra.mxu0 %v543
        %563 = vmatprep.subr.bf16.mxu0 0
        %564 = vmatpush1.bf16.msra.mxu0 %v544
        %565 = vmatprep.subr.bf16.mxu0 0
        %566 = vmatpush1.bf16.msra.mxu0 %v545
        %567 = vmatprep.subr.bf16.mxu0 0
        %568 = vmatpush1.bf16.msra.mxu0 %v546
        %569 = vmatprep.subr.bf16.mxu0 0
        %570 = vmatpush1.bf16.msra.mxu0 %v547
        %571 = vmatprep.subr.bf16.mxu0 0
        %572 = vmatpush1.bf16.msra.mxu0 %v548
        %573 = vmatprep.subr.bf16.mxu0 0
        %574 = vmatpush1.bf16.msra.mxu0 0
        %575 = vmatprep.subr.bf16.mxu0 0
        %576 = vmatpush1.bf16.msra.mxu0 0
        %577 = vmatprep.subr.bf16.mxu0 0
        %578 = vmatpush1.bf16.msra.mxu0 0
        %579 = vmatprep.subr.bf16.mxu0 0
        %580 = vmatpush1.bf16.msra.mxu0 0
        %581 = vmatprep.subr.bf16.mxu0 0
        %582 = vmatpush1.bf16.msra.mxu0 0
        %583 = vmatprep.subr.bf16.mxu0 0
        %584 = vmatpush1.bf16.msra.mxu0 0
        %585 = vmatprep.subr.bf16.mxu0 0
        %586 = vmatpush1.bf16.msra.mxu0 0
        %587 = vmatprep.subr.bf16.mxu0 0
        %588 = vmatpush1.bf16.msra.mxu0 0
        %589 = vmatprep.mubr.bf16.mxu0 0
        %590 = vmatmul.mubr.bf16.gmra.mrb[0].mxu0 %v493
        %v591 = vpop.f32.mrb[0].mxu0
        %v592 = vadd.f32 0.0, %v591
        %v593 = vpop.f32.mrb[0].mxu0
        %v594 = vpop.f32.mrb[0].mxu0
        %v595 = vadd.f32 0.0, %v594
        %v596 = vpop.f32.mrb[0].mxu0
        %597 = vmatprep.mubr.bf16.mxu0 0
        %598 = vmatmul.mubr.bf16.gmra.mrb[0].mxu0 %v494
        %v599 = vpop.f32.mrb[0].mxu0
        %v600 = vadd.f32 0.0, %v599
        %v601 = vpop.f32.mrb[0].mxu0
        %v602 = vpop.f32.mrb[0].mxu0
        %v603 = vadd.f32 0.0, %v602
        %v604 = vpop.f32.mrb[0].mxu0
        %605 = vmatprep.mubr.bf16.mxu0 0
        %606 = vmatmul.mubr.bf16.gmra.mrb[0].mxu0 %v495
        %v607 = vpop.f32.mrb[0].mxu0
        %v608 = vadd.f32 0.0, %v607
        %v609 = vpop.f32.mrb[0].mxu0
        %v610 = vpop.f32.mrb[0].mxu0
        %v611 = vadd.f32 0.0, %v610
        %v612 = vpop.f32.mrb[0].mxu0
        %613 = vmatprep.mubr.bf16.mxu0 0
        %614 = vmatmul.mubr.bf16.gmra.mrb[0].mxu0 %v496
        %v615 = vpop.f32.mrb[0].mxu0
        %v616 = vadd.f32 0.0, %v615
        %v617 = vpop.f32.mrb[0].mxu0
        %v618 = vpop.f32.mrb[0].mxu0
        %v619 = vadd.f32 0.0, %v618
        %v620 = vpop.f32.mrb[0].mxu0
        %621 = vmatprep.mubr.bf16.mxu0 0
        %622 = vmatmul.mubr.bf16.gmra.mrb[0].mxu0 %v497
        %v623 = vpop.f32.mrb[0].mxu0
        %v624 = vadd.f32 0.0, %v623
        %v625 = vpop.f32.mrb[0].mxu0
        %v626 = vpop.f32.mrb[0].mxu0
        %v627 = vadd.f32 0.0, %v626
        %v628 = vpop.f32.mrb[0].mxu0
        %629 = vmatprep.mubr.bf16.mxu0 0
        %630 = vmatmul.mubr.bf16.gmra.mrb[0].mxu0 %v498
        %v631 = vpop.f32.mrb[0].mxu0
        %v632 = vadd.f32 0.0, %v631
        %v633 = vpop.f32.mrb[0].mxu0
        %v634 = vpop.f32.mrb[0].mxu0
        %v635 = vadd.f32 0.0, %v634
        %v636 = vpop.f32.mrb[0].mxu0
        %637 = vmatprep.mubr.bf16.mxu0 0
        %638 = vmatmul.mubr.bf16.gmra.mrb[0].mxu0 %v499
        %v639 = vpop.f32.mrb[0].mxu0
        %v640 = vadd.f32 0.0, %v639
        %v641 = vpop.f32.mrb[0].mxu0
        %v642 = vpop.f32.mrb[0].mxu0
        %v643 = vadd.f32 0.0, %v642
        %v644 = vpop.f32.mrb[0].mxu0
        %645 = vmatprep.mubr.bf16.mxu0 0
        %646 = vmatmul.mubr.bf16.gmra.mrb[0].mxu0 %v500
        %v647 = vpop.f32.mrb[0].mxu0
        %v648 = vadd.f32 0.0, %v647
        %v649 = vpop.f32.mrb[0].mxu0
        %v650 = vpop.f32.mrb[0].mxu0
        %v651 = vadd.f32 0.0, %v650
        %v652 = vpop.f32.mrb[0].mxu0
        %653 = vdwg.mxu0
        %v654 = vpack.c.bf16 %v595, %v592
        %v655 = vpack.c.bf16 %v603, %v600
        %v656 = vpack.c.bf16 %v611, %v608
        %v657 = vpack.c.bf16 %v619, %v616
        %v658 = vpack.c.bf16 %v627, %v624
        %v659 = vpack.c.bf16 %v635, %v632
        %v660 = vpack.c.bf16 %v643, %v640
        %v661 = vpack.c.bf16 %v651, %v648
        %v662 = vld [vmem:[%s4] sm:$0x1]
        %v664 = vlaneseq
        %v665 = vshrl.u32 %v664, 7
        %v666 = vsub.s32 0, %v665
        %v667 = vrot.slane %v662, %v666
        %v685 = vunpack.c.l.b16 %v413
        %v686 = vunpack.c.l.b16 %v414
        %v687 = vunpack.c.l.b16 %v415
        %v688 = vunpack.c.l.b16 %v416
        %v689 = vunpack.c.l.b16 %v417
        %v690 = vunpack.c.l.b16 %v418
        %v691 = vunpack.c.l.b16 %v419
        %v692 = vunpack.c.l.b16 %v420
        %v693 = vunpack.c.l.b16 %v421
        %v694 = vunpack.c.l.b16 %v422
        %v695 = vunpack.c.l.b16 %v423
        %v696 = vunpack.c.l.b16 %v424
        %v697 = vunpack.c.l.b16 %v425
        %v698 = vunpack.c.l.b16 %v426
        %v699 = vunpack.c.l.b16 %v427
        %v700 = vunpack.c.l.b16 %v428
        %v701 = vpack.c.b16 %v686, %v685
        %v702 = vpack.c.b16 %v688, %v687
        %v703 = vpack.c.b16 %v690, %v689
        %v704 = vpack.c.b16 %v692, %v691
        %v705 = vpack.c.b16 %v694, %v693
        %v706 = vpack.c.b16 %v696, %v695
        %v707 = vpack.c.b16 %v698, %v697
        %v708 = vpack.c.b16 %v700, %v699
        %717 = vmatprep.subr.bf16.mxu0 0
        %718 = vmatpush1.bf16.msra.mxu0 %v654
        %719 = vmatprep.subr.bf16.mxu0 0
        %720 = vmatpush1.bf16.msra.mxu0 %v655
        %721 = vmatprep.subr.bf16.mxu0 0
        %722 = vmatpush1.bf16.msra.mxu0 %v656
        %723 = vmatprep.subr.bf16.mxu0 0
        %724 = vmatpush1.bf16.msra.mxu0 %v657
        %725 = vmatprep.subr.bf16.mxu0 0
        %726 = vmatpush1.bf16.msra.mxu0 %v658
        %727 = vmatprep.subr.bf16.mxu0 0
        %728 = vmatpush1.bf16.msra.mxu0 %v659
        %729 = vmatprep.subr.bf16.mxu0 0
        %730 = vmatpush1.bf16.msra.mxu0 %v660
        %731 = vmatprep.subr.bf16.mxu0 0
        %732 = vmatpush1.bf16.msra.mxu0 %v661
        %733 = vmatprep.subr.bf16.mxu0 0
        %734 = vmatpush1.bf16.msra.mxu0 0
        %735 = vmatprep.subr.bf16.mxu0 0
        %736 = vmatpush1.bf16.msra.mxu0 0
        %737 = vmatprep.subr.bf16.mxu0 0
        %738 = vmatpush1.bf16.msra.mxu0 0
        %739 = vmatprep.subr.bf16.mxu0 0
        %740 = vmatpush1.bf16.msra.mxu0 0
        %741 = vmatprep.subr.bf16.mxu0 0
        %742 = vmatpush1.bf16.msra.mxu0 0
        %743 = vmatprep.subr.bf16.mxu0 0
        %744 = vmatpush1.bf16.msra.mxu0 0
        %745 = vmatprep.subr.bf16.mxu0 0
        %746 = vmatpush1.bf16.msra.mxu0 0
        %747 = vmatprep.subr.bf16.mxu0 0
        %748 = vmatpush1.bf16.msra.mxu0 0
        %749 = vmatprep.mubr.bf16.mxu0 0
        %750 = vmatmul.mubr.bf16.gmra.mrb[0].mxu0 %v701
        %v751 = vpop.f32.mrb[0].mxu0
        %v752 = vadd.f32 %v667, %v751
        %v753 = vpop.f32.mrb[0].mxu0
        %v754 = vpop.f32.mrb[0].mxu0
        %v755 = vadd.f32 %v667, %v754
        %v756 = vpop.f32.mrb[0].mxu0
        %757 = vmatprep.mubr.bf16.mxu0 0
        %758 = vmatmul.mubr.bf16.gmra.mrb[0].mxu0 %v702
        %v759 = vpop.f32.mrb[0].mxu0
        %v760 = vadd.f32 %v667, %v759
        %v761 = vpop.f32.mrb[0].mxu0
        %v762 = vpop.f32.mrb[0].mxu0
        %v763 = vadd.f32 %v667, %v762
        %v764 = vpop.f32.mrb[0].mxu0
        %765 = vmatprep.mubr.bf16.mxu0 0
        %766 = vmatmul.mubr.bf16.gmra.mrb[0].mxu0 %v703
        %v767 = vpop.f32.mrb[0].mxu0
        %v768 = vadd.f32 %v667, %v767
        %v769 = vpop.f32.mrb[0].mxu0
        %v770 = vpop.f32.mrb[0].mxu0
        %v771 = vadd.f32 %v667, %v770
        %v772 = vpop.f32.mrb[0].mxu0
        %773 = vmatprep.mubr.bf16.mxu0 0
        %774 = vmatmul.mubr.bf16.gmra.mrb[0].mxu0 %v704
        %v775 = vpop.f32.mrb[0].mxu0
        %v776 = vadd.f32 %v667, %v775
        %v777 = vpop.f32.mrb[0].mxu0
        %v778 = vpop.f32.mrb[0].mxu0
        %v779 = vadd.f32 %v667, %v778
        %v780 = vpop.f32.mrb[0].mxu0
        %781 = vmatprep.mubr.bf16.mxu0 0
        %782 = vmatmul.mubr.bf16.gmra.mrb[0].mxu0 %v705
        %v783 = vpop.f32.mrb[0].mxu0
        %v784 = vadd.f32 %v667, %v783
        %v785 = vpop.f32.mrb[0].mxu0
        %v786 = vpop.f32.mrb[0].mxu0
        %v787 = vadd.f32 %v667, %v786
        %v788 = vpop.f32.mrb[0].mxu0
        %789 = vmatprep.mubr.bf16.mxu0 0
        %790 = vmatmul.mubr.bf16.gmra.mrb[0].mxu0 %v706
        %v791 = vpop.f32.mrb[0].mxu0
        %v792 = vadd.f32 %v667, %v791
        %v793 = vpop.f32.mrb[0].mxu0
        %v794 = vpop.f32.mrb[0].mxu0
        %v795 = vadd.f32 %v667, %v794
        %v796 = vpop.f32.mrb[0].mxu0
        %797 = vmatprep.mubr.bf16.mxu0 0
        %798 = vmatmul.mubr.bf16.gmra.mrb[0].mxu0 %v707
        %v799 = vpop.f32.mrb[0].mxu0
        %v800 = vadd.f32 %v667, %v799
        %v801 = vpop.f32.mrb[0].mxu0
        %v802 = vpop.f32.mrb[0].mxu0
        %v803 = vadd.f32 %v667, %v802
        %v804 = vpop.f32.mrb[0].mxu0
        %805 = vmatprep.mubr.bf16.mxu0 0
        %806 = vmatmul.mubr.bf16.gmra.mrb[0].mxu0 %v708
        %v807 = vpop.f32.mrb[0].mxu0
        %v808 = vadd.f32 %v667, %v807
        %v809 = vpop.f32.mrb[0].mxu0
        %v810 = vpop.f32.mrb[0].mxu0
        %v811 = vadd.f32 %v667, %v810
        %v812 = vpop.f32.mrb[0].mxu0
        %813 = vdwg.mxu0
        %v814 = vmax.f32 %v752, 0.0
        %v815 = vmax.f32 %v755, 0.0
        %v816 = vmax.f32 %v760, 0.0
        %v817 = vmax.f32 %v763, 0.0
        %v818 = vmax.f32 %v768, 0.0
        %v819 = vmax.f32 %v771, 0.0
        %v820 = vmax.f32 %v776, 0.0
        %v821 = vmax.f32 %v779, 0.0
        %v822 = vmax.f32 %v784, 0.0
        %v823 = vmax.f32 %v787, 0.0
        %v824 = vmax.f32 %v792, 0.0
        %v825 = vmax.f32 %v795, 0.0
        %v826 = vmax.f32 %v800, 0.0
        %v827 = vmax.f32 %v803, 0.0
        %v828 = vmax.f32 %v808, 0.0
        %v829 = vmax.f32 %v811, 0.0
        %v830 = vpack.c.bf16 %v815, %v814
        %v831 = vpack.c.bf16 %v817, %v816
        %v832 = vpack.c.bf16 %v819, %v818
        %v833 = vpack.c.bf16 %v821, %v820
        %v834 = vpack.c.bf16 %v823, %v822
        %v835 = vpack.c.bf16 %v825, %v824
        %v836 = vpack.c.bf16 %v827, %v826
        %v837 = vpack.c.bf16 %v829, %v828
        %v838 = vld [vmem:[#allocation10] sm:$0xf]
        %v839 = vld [vmem:[#allocation10 + $0x4] sm:$0xf]
        %v840 = vld [vmem:[#allocation10 + $0x8] sm:$0xf]
        %v841 = vld [vmem:[#allocation10 + $0xc] sm:$0xf]
        %v842 = vld [vmem:[#allocation10 + $0x10] sm:$0xf]
        %v843 = vld [vmem:[#allocation10 + $0x14] sm:$0xf]
        %v844 = vld [vmem:[#allocation10 + $0x18] sm:$0xf]
        %v845 = vld [vmem:[#allocation10 + $0x1c] sm:$0xf]
        %v846 = vld [vmem:[#allocation10 + $0x20] sm:$0xf]
        %v847 = vld [vmem:[#allocation10 + $0x24] sm:$0xf]
        %v848 = vld [vmem:[#allocation10 + $0x28] sm:$0xf]
        %v849 = vld [vmem:[#allocation10 + $0x2c] sm:$0xf]
        %v850 = vld [vmem:[#allocation10 + $0x30] sm:$0xf]
        %v851 = vld [vmem:[#allocation10 + $0x34] sm:$0xf]
        %v852 = vld [vmem:[#allocation10 + $0x38] sm:$0xf]
        %v853 = vld [vmem:[#allocation10 + $0x3c] sm:$0xf]
        %v870 = vunpack.c.l.b16 %v838
        %v871 = vunpack.c.l.b16 %v839
        %v872 = vunpack.c.l.b16 %v840
        %v873 = vunpack.c.l.b16 %v841
        %v874 = vunpack.c.l.b16 %v842
        %v875 = vunpack.c.l.b16 %v843
        %v876 = vunpack.c.l.b16 %v844
        %v877 = vunpack.c.l.b16 %v845
        %v878 = vunpack.c.l.b16 %v846
        %v879 = vunpack.c.l.b16 %v847
        %v880 = vunpack.c.l.b16 %v848
        %v881 = vunpack.c.l.b16 %v849
        %v882 = vunpack.c.l.b16 %v850
        %v883 = vunpack.c.l.b16 %v851
        %v884 = vunpack.c.l.b16 %v852
        %v885 = vunpack.c.l.b16 %v853
        %v886 = vpack.c.b16 %v871, %v870
        %v887 = vpack.c.b16 %v873, %v872
        %v888 = vpack.c.b16 %v875, %v874
        %v889 = vpack.c.b16 %v877, %v876
        %v890 = vpack.c.b16 %v879, %v878
        %v891 = vpack.c.b16 %v881, %v880
        %v892 = vpack.c.b16 %v883, %v882
        %v893 = vpack.c.b16 %v885, %v884
        %902 = vmatprep.subr.bf16.mxu0 0
        %903 = vmatpush1.bf16.msra.mxu0 %v886
        %904 = vmatprep.subr.bf16.mxu0 0
        %905 = vmatpush1.bf16.msra.mxu0 %v887
        %906 = vmatprep.subr.bf16.mxu0 0
        %907 = vmatpush1.bf16.msra.mxu0 %v888
        %908 = vmatprep.subr.bf16.mxu0 0
        %909 = vmatpush1.bf16.msra.mxu0 %v889
        %910 = vmatprep.subr.bf16.mxu0 0
        %911 = vmatpush1.bf16.msra.mxu0 %v890
        %912 = vmatprep.subr.bf16.mxu0 0
        %913 = vmatpush1.bf16.msra.mxu0 %v891
        %914 = vmatprep.subr.bf16.mxu0 0
        %915 = vmatpush1.bf16.msra.mxu0 %v892
        %916 = vmatprep.subr.bf16.mxu0 0
        %917 = vmatpush1.bf16.msra.mxu0 %v893
        %918 = vmatprep.subr.bf16.mxu0 0
        %919 = vmatpush1.bf16.msra.mxu0 0
        %920 = vmatprep.subr.bf16.mxu0 0
        %921 = vmatpush1.bf16.msra.mxu0 0
        %922 = vmatprep.subr.bf16.mxu0 0
        %923 = vmatpush1.bf16.msra.mxu0 0
        %924 = vmatprep.subr.bf16.mxu0 0
        %925 = vmatpush1.bf16.msra.mxu0 0
        %926 = vmatprep.subr.bf16.mxu0 0
        %927 = vmatpush1.bf16.msra.mxu0 0
        %928 = vmatprep.subr.bf16.mxu0 0
        %929 = vmatpush1.bf16.msra.mxu0 0
        %930 = vmatprep.subr.bf16.mxu0 0
        %931 = vmatpush1.bf16.msra.mxu0 0
        %932 = vmatprep.subr.bf16.mxu0 0
        %933 = vmatpush1.bf16.msra.mxu0 0
        %934 = vmatprep.mubr.bf16.mxu0 0
        %935 = vmatmul.mubr.bf16.gmra.mrb[0].mxu0 %v830
        %v936 = vpop.f32.mrb[0].mxu0
        %v937 = vadd.f32 0.0, %v936
        %v938 = vpop.f32.mrb[0].mxu0
        %v939 = vpop.f32.mrb[0].mxu0
        %v940 = vadd.f32 0.0, %v939
        %v941 = vpop.f32.mrb[0].mxu0
        %942 = vmatprep.mubr.bf16.mxu0 0
        %943 = vmatmul.mubr.bf16.gmra.mrb[0].mxu0 %v831
        %v944 = vpop.f32.mrb[0].mxu0
        %v945 = vadd.f32 0.0, %v944
        %v946 = vpop.f32.mrb[0].mxu0
        %v947 = vpop.f32.mrb[0].mxu0
        %v948 = vadd.f32 0.0, %v947
        %v949 = vpop.f32.mrb[0].mxu0
        %950 = vmatprep.mubr.bf16.mxu0 0
        %951 = vmatmul.mubr.bf16.gmra.mrb[0].mxu0 %v832
        %v952 = vpop.f32.mrb[0].mxu0
        %v953 = vadd.f32 0.0, %v952
        %v954 = vpop.f32.mrb[0].mxu0
        %v955 = vpop.f32.mrb[0].mxu0
        %v956 = vadd.f32 0.0, %v955
        %v957 = vpop.f32.mrb[0].mxu0
        %958 = vmatprep.mubr.bf16.mxu0 0
        %959 = vmatmul.mubr.bf16.gmra.mrb[0].mxu0 %v833
        %v960 = vpop.f32.mrb[0].mxu0
        %v961 = vadd.f32 0.0, %v960
        %v962 = vpop.f32.mrb[0].mxu0
        %v963 = vpop.f32.mrb[0].mxu0
        %v964 = vadd.f32 0.0, %v963
        %v965 = vpop.f32.mrb[0].mxu0
        %966 = vmatprep.mubr.bf16.mxu0 0
        %967 = vmatmul.mubr.bf16.gmra.mrb[0].mxu0 %v834
        %v968 = vpop.f32.mrb[0].mxu0
        %v969 = vadd.f32 0.0, %v968
        %v970 = vpop.f32.mrb[0].mxu0
        %v971 = vpop.f32.mrb[0].mxu0
        %v972 = vadd.f32 0.0, %v971
        %v973 = vpop.f32.mrb[0].mxu0
        %974 = vmatprep.mubr.bf16.mxu0 0
        %975 = vmatmul.mubr.bf16.gmra.mrb[0].mxu0 %v835
        %v976 = vpop.f32.mrb[0].mxu0
        %v977 = vadd.f32 0.0, %v976
        %v978 = vpop.f32.mrb[0].mxu0
        %v979 = vpop.f32.mrb[0].mxu0
        %v980 = vadd.f32 0.0, %v979
        %v981 = vpop.f32.mrb[0].mxu0
        %982 = vmatprep.mubr.bf16.mxu0 0
        %983 = vmatmul.mubr.bf16.gmra.mrb[0].mxu0 %v836
        %v984 = vpop.f32.mrb[0].mxu0
        %v985 = vadd.f32 0.0, %v984
        %v986 = vpop.f32.mrb[0].mxu0
        %v987 = vpop.f32.mrb[0].mxu0
        %v988 = vadd.f32 0.0, %v987
        %v989 = vpop.f32.mrb[0].mxu0
        %990 = vmatprep.mubr.bf16.mxu0 0
        %991 = vmatmul.mubr.bf16.gmra.mrb[0].mxu0 %v837
        %v992 = vpop.f32.mrb[0].mxu0
        %v993 = vadd.f32 0.0, %v992
        %v994 = vpop.f32.mrb[0].mxu0
        %v995 = vpop.f32.mrb[0].mxu0
        %v996 = vadd.f32 0.0, %v995
        %v997 = vpop.f32.mrb[0].mxu0
        %998 = vdwg.mxu0
        %v999 = vpack.c.bf16 %v940, %v937
        %v1000 = vpack.c.bf16 %v948, %v945
        %v1001 = vpack.c.bf16 %v956, %v953
        %v1002 = vpack.c.bf16 %v964, %v961
        %v1003 = vpack.c.bf16 %v972, %v969
        %v1004 = vpack.c.bf16 %v980, %v977
        %v1005 = vpack.c.bf16 %v988, %v985
        %v1006 = vpack.c.bf16 %v996, %v993
        %v1007 = vld [vmem:[%s6] sm:$0x1]
        %v1009 = vlaneseq
        %v1010 = vshrl.u32 %v1009, 7
        %v1011 = vsub.s32 0, %v1010
        %v1012 = vrot.slane %v1007, %v1011
        %1014 = vmatprep.subr.bf16.mxu0 0
        %1015 = vmatpush1.bf16.msra.mxu0 %v999
        %1016 = vmatprep.subr.bf16.mxu0 0
        %1017 = vmatpush1.bf16.msra.mxu0 %v1000
        %1018 = vmatprep.subr.bf16.mxu0 0
        %1019 = vmatpush1.bf16.msra.mxu0 %v1001
        %1020 = vmatprep.subr.bf16.mxu0 0
        %1021 = vmatpush1.bf16.msra.mxu0 %v1002
        %1022 = vmatprep.subr.bf16.mxu0 0
        %1023 = vmatpush1.bf16.msra.mxu0 %v1003
        %1024 = vmatprep.subr.bf16.mxu0 0
        %1025 = vmatpush1.bf16.msra.mxu0 %v1004
        %1026 = vmatprep.subr.bf16.mxu0 0
        %1027 = vmatpush1.bf16.msra.mxu0 %v1005
        %1028 = vmatprep.subr.bf16.mxu0 0
        %1029 = vmatpush1.bf16.msra.mxu0 %v1006
        %1030 = vmatprep.subr.bf16.mxu0 0
        %1031 = vmatpush1.bf16.msra.mxu0 0
        %1032 = vmatprep.subr.bf16.mxu0 0
        %1033 = vmatpush1.bf16.msra.mxu0 0
        %1034 = vmatprep.subr.bf16.mxu0 0
        %1035 = vmatpush1.bf16.msra.mxu0 0
        %1036 = vmatprep.subr.bf16.mxu0 0
        %1037 = vmatpush1.bf16.msra.mxu0 0
        %1038 = vmatprep.subr.bf16.mxu0 0
        %1039 = vmatpush1.bf16.msra.mxu0 0
        %1040 = vmatprep.subr.bf16.mxu0 0
        %1041 = vmatpush1.bf16.msra.mxu0 0
        %1042 = vmatprep.subr.bf16.mxu0 0
        %1043 = vmatpush1.bf16.msra.mxu0 0
        %1044 = vmatprep.subr.bf16.mxu0 0
        %1045 = vmatpush1.bf16.msra.mxu0 0
        %1046 = vmatprep.mubr.bf16.mxu0 0
        %1047 = vmatmul.mubr.bf16.gmra.mrb[0].mxu0 %v701
        %v1048 = vpop.f32.mrb[0].mxu0
        %v1049 = vadd.f32 %v1012, %v1048
        %v1050 = vpop.f32.mrb[0].mxu0
        %v1051 = vpop.f32.mrb[0].mxu0
        %v1052 = vadd.f32 %v1012, %v1051
        %v1053 = vpop.f32.mrb[0].mxu0
        %1054 = vmatprep.mubr.bf16.mxu0 0
        %1055 = vmatmul.mubr.bf16.gmra.mrb[0].mxu0 %v702
        %v1056 = vpop.f32.mrb[0].mxu0
        %v1057 = vadd.f32 %v1012, %v1056
        %v1058 = vpop.f32.mrb[0].mxu0
        %v1059 = vpop.f32.mrb[0].mxu0
        %v1060 = vadd.f32 %v1012, %v1059
        %v1061 = vpop.f32.mrb[0].mxu0
        %1062 = vmatprep.mubr.bf16.mxu0 0
        %1063 = vmatmul.mubr.bf16.gmra.mrb[0].mxu0 %v703
        %v1064 = vpop.f32.mrb[0].mxu0
        %v1065 = vadd.f32 %v1012, %v1064
        %v1066 = vpop.f32.mrb[0].mxu0
        %v1067 = vpop.f32.mrb[0].mxu0
        %v1068 = vadd.f32 %v1012, %v1067
        %v1069 = vpop.f32.mrb[0].mxu0
        %1070 = vmatprep.mubr.bf16.mxu0 0
        %1071 = vmatmul.mubr.bf16.gmra.mrb[0].mxu0 %v704
        %v1072 = vpop.f32.mrb[0].mxu0
        %v1073 = vadd.f32 %v1012, %v1072
        %v1074 = vpop.f32.mrb[0].mxu0
        %v1075 = vpop.f32.mrb[0].mxu0
        %v1076 = vadd.f32 %v1012, %v1075
        %v1077 = vpop.f32.mrb[0].mxu0
        %1078 = vmatprep.mubr.bf16.mxu0 0
        %1079 = vmatmul.mubr.bf16.gmra.mrb[0].mxu0 %v705
        %v1080 = vpop.f32.mrb[0].mxu0
        %v1081 = vadd.f32 %v1012, %v1080
        %v1082 = vpop.f32.mrb[0].mxu0
        %v1083 = vpop.f32.mrb[0].mxu0
        %v1084 = vadd.f32 %v1012, %v1083
        %v1085 = vpop.f32.mrb[0].mxu0
        %1086 = vmatprep.mubr.bf16.mxu0 0
        %1087 = vmatmul.mubr.bf16.gmra.mrb[0].mxu0 %v706
        %v1088 = vpop.f32.mrb[0].mxu0
        %v1089 = vadd.f32 %v1012, %v1088
        %v1090 = vpop.f32.mrb[0].mxu0
        %v1091 = vpop.f32.mrb[0].mxu0
        %v1092 = vadd.f32 %v1012, %v1091
        %v1093 = vpop.f32.mrb[0].mxu0
        %1094 = vmatprep.mubr.bf16.mxu0 0
        %1095 = vmatmul.mubr.bf16.gmra.mrb[0].mxu0 %v707
        %v1096 = vpop.f32.mrb[0].mxu0
        %v1097 = vadd.f32 %v1012, %v1096
        %v1098 = vpop.f32.mrb[0].mxu0
        %v1099 = vpop.f32.mrb[0].mxu0
        %v1100 = vadd.f32 %v1012, %v1099
        %v1101 = vpop.f32.mrb[0].mxu0
        %1102 = vmatprep.mubr.bf16.mxu0 0
        %1103 = vmatmul.mubr.bf16.gmra.mrb[0].mxu0 %v708
        %v1104 = vpop.f32.mrb[0].mxu0
        %v1105 = vadd.f32 %v1012, %v1104
        %v1106 = vpop.f32.mrb[0].mxu0
        %v1107 = vpop.f32.mrb[0].mxu0
        %v1108 = vadd.f32 %v1012, %v1107
        %v1109 = vpop.f32.mrb[0].mxu0
        %1110 = vdwg.mxu0
        %v1111 = vmax.f32 %v1049, 0.0
        %v1112 = vmax.f32 %v1052, 0.0
        %v1113 = vmax.f32 %v1057, 0.0
        %v1114 = vmax.f32 %v1060, 0.0
        %v1115 = vmax.f32 %v1065, 0.0
        %v1116 = vmax.f32 %v1068, 0.0
        %v1117 = vmax.f32 %v1073, 0.0
        %v1118 = vmax.f32 %v1076, 0.0
        %v1119 = vmax.f32 %v1081, 0.0
        %v1120 = vmax.f32 %v1084, 0.0
        %v1121 = vmax.f32 %v1089, 0.0
        %v1122 = vmax.f32 %v1092, 0.0
        %v1123 = vmax.f32 %v1097, 0.0
        %v1124 = vmax.f32 %v1100, 0.0
        %v1125 = vmax.f32 %v1105, 0.0
        %v1126 = vmax.f32 %v1108, 0.0
        %v1127 = vpack.c.bf16 %v1112, %v1111
        %v1128 = vpack.c.bf16 %v1114, %v1113
        %v1129 = vpack.c.bf16 %v1116, %v1115
        %v1130 = vpack.c.bf16 %v1118, %v1117
        %v1131 = vpack.c.bf16 %v1120, %v1119
        %v1132 = vpack.c.bf16 %v1122, %v1121
        %v1133 = vpack.c.bf16 %v1124, %v1123
        %v1134 = vpack.c.bf16 %v1126, %v1125
        %v1135 = vld [vmem:[#allocation12] sm:$0xf]
        %v1136 = vld [vmem:[#allocation12 + $0x4] sm:$0xf]
        %v1137 = vld [vmem:[#allocation12 + $0x8] sm:$0xf]
        %v1138 = vld [vmem:[#allocation12 + $0xc] sm:$0xf]
        %v1139 = vld [vmem:[#allocation12 + $0x10] sm:$0xf]
        %v1140 = vld [vmem:[#allocation12 + $0x14] sm:$0xf]
        %v1141 = vld [vmem:[#allocation12 + $0x18] sm:$0xf]
        %v1142 = vld [vmem:[#allocation12 + $0x1c] sm:$0xf]
        %v1143 = vld [vmem:[#allocation12 + $0x20] sm:$0xf]
        %v1144 = vld [vmem:[#allocation12 + $0x24] sm:$0xf]
        %v1145 = vld [vmem:[#allocation12 + $0x28] sm:$0xf]
        %v1146 = vld [vmem:[#allocation12 + $0x2c] sm:$0xf]
        %v1147 = vld [vmem:[#allocation12 + $0x30] sm:$0xf]
        %v1148 = vld [vmem:[#allocation12 + $0x34] sm:$0xf]
        %v1149 = vld [vmem:[#allocation12 + $0x38] sm:$0xf]
        %v1150 = vld [vmem:[#allocation12 + $0x3c] sm:$0xf]
        %v1167 = vunpack.c.l.b16 %v1135
        %v1168 = vunpack.c.l.b16 %v1136
        %v1169 = vunpack.c.l.b16 %v1137
        %v1170 = vunpack.c.l.b16 %v1138
        %v1171 = vunpack.c.l.b16 %v1139
        %v1172 = vunpack.c.l.b16 %v1140
        %v1173 = vunpack.c.l.b16 %v1141
        %v1174 = vunpack.c.l.b16 %v1142
        %v1175 = vunpack.c.l.b16 %v1143
        %v1176 = vunpack.c.l.b16 %v1144
        %v1177 = vunpack.c.l.b16 %v1145
        %v1178 = vunpack.c.l.b16 %v1146
        %v1179 = vunpack.c.l.b16 %v1147
        %v1180 = vunpack.c.l.b16 %v1148
        %v1181 = vunpack.c.l.b16 %v1149
        %v1182 = vunpack.c.l.b16 %v1150
        %v1183 = vpack.c.b16 %v1168, %v1167
        %v1184 = vpack.c.b16 %v1170, %v1169
        %v1185 = vpack.c.b16 %v1172, %v1171
        %v1186 = vpack.c.b16 %v1174, %v1173
        %v1187 = vpack.c.b16 %v1176, %v1175
        %v1188 = vpack.c.b16 %v1178, %v1177
        %v1189 = vpack.c.b16 %v1180, %v1179
        %v1190 = vpack.c.b16 %v1182, %v1181
        %1199 = vmatprep.subr.bf16.mxu0 0
        %1200 = vmatpush1.bf16.msra.mxu0 %v1183
        %1201 = vmatprep.subr.bf16.mxu0 0
        %1202 = vmatpush1.bf16.msra.mxu0 %v1184
        %1203 = vmatprep.subr.bf16.mxu0 0
        %1204 = vmatpush1.bf16.msra.mxu0 %v1185
        %1205 = vmatprep.subr.bf16.mxu0 0
        %1206 = vmatpush1.bf16.msra.mxu0 %v1186
        %1207 = vmatprep.subr.bf16.mxu0 0
        %1208 = vmatpush1.bf16.msra.mxu0 %v1187
        %1209 = vmatprep.subr.bf16.mxu0 0
        %1210 = vmatpush1.bf16.msra.mxu0 %v1188
        %1211 = vmatprep.subr.bf16.mxu0 0
        %1212 = vmatpush1.bf16.msra.mxu0 %v1189
        %1213 = vmatprep.subr.bf16.mxu0 0
        %1214 = vmatpush1.bf16.msra.mxu0 %v1190
        %1215 = vmatprep.subr.bf16.mxu0 0
        %1216 = vmatpush1.bf16.msra.mxu0 0
        %1217 = vmatprep.subr.bf16.mxu0 0
        %1218 = vmatpush1.bf16.msra.mxu0 0
        %1219 = vmatprep.subr.bf16.mxu0 0
        %1220 = vmatpush1.bf16.msra.mxu0 0
        %1221 = vmatprep.subr.bf16.mxu0 0
        %1222 = vmatpush1.bf16.msra.mxu0 0
        %1223 = vmatprep.subr.bf16.mxu0 0
        %1224 = vmatpush1.bf16.msra.mxu0 0
        %1225 = vmatprep.subr.bf16.mxu0 0
        %1226 = vmatpush1.bf16.msra.mxu0 0
        %1227 = vmatprep.subr.bf16.mxu0 0
        %1228 = vmatpush1.bf16.msra.mxu0 0
        %1229 = vmatprep.subr.bf16.mxu0 0
        %1230 = vmatpush1.bf16.msra.mxu0 0
        %1231 = vmatprep.mubr.bf16.mxu0 0
        %1232 = vmatmul.mubr.bf16.gmra.mrb[0].mxu0 %v1127
        %v1233 = vpop.f32.mrb[0].mxu0
        %v1234 = vadd.f32 0.0, %v1233
        %v1235 = vpop.f32.mrb[0].mxu0
        %v1236 = vpop.f32.mrb[0].mxu0
        %v1237 = vadd.f32 0.0, %v1236
        %v1238 = vpop.f32.mrb[0].mxu0
        %1239 = vmatprep.mubr.bf16.mxu0 0
        %1240 = vmatmul.mubr.bf16.gmra.mrb[0].mxu0 %v1128
        %v1241 = vpop.f32.mrb[0].mxu0
        %v1242 = vadd.f32 0.0, %v1241
        %v1243 = vpop.f32.mrb[0].mxu0
        %v1244 = vpop.f32.mrb[0].mxu0
        %v1245 = vadd.f32 0.0, %v1244
        %v1246 = vpop.f32.mrb[0].mxu0
        %1247 = vmatprep.mubr.bf16.mxu0 0
        %1248 = vmatmul.mubr.bf16.gmra.mrb[0].mxu0 %v1129
        %v1249 = vpop.f32.mrb[0].mxu0
        %v1250 = vadd.f32 0.0, %v1249
        %v1251 = vpop.f32.mrb[0].mxu0
        %v1252 = vpop.f32.mrb[0].mxu0
        %v1253 = vadd.f32 0.0, %v1252
        %v1254 = vpop.f32.mrb[0].mxu0
        %1255 = vmatprep.mubr.bf16.mxu0 0
        %1256 = vmatmul.mubr.bf16.gmra.mrb[0].mxu0 %v1130
        %v1257 = vpop.f32.mrb[0].mxu0
        %v1258 = vadd.f32 0.0, %v1257
        %v1259 = vpop.f32.mrb[0].mxu0
        %v1260 = vpop.f32.mrb[0].mxu0
        %v1261 = vadd.f32 0.0, %v1260
        %v1262 = vpop.f32.mrb[0].mxu0
        %1263 = vmatprep.mubr.bf16.mxu0 0
        %1264 = vmatmul.mubr.bf16.gmra.mrb[0].mxu0 %v1131
        %v1265 = vpop.f32.mrb[0].mxu0
        %v1266 = vadd.f32 0.0, %v1265
        %v1267 = vpop.f32.mrb[0].mxu0
        %v1268 = vpop.f32.mrb[0].mxu0
        %v1269 = vadd.f32 0.0, %v1268
        %v1270 = vpop.f32.mrb[0].mxu0
        %1271 = vmatprep.mubr.bf16.mxu0 0
        %1272 = vmatmul.mubr.bf16.gmra.mrb[0].mxu0 %v1132
        %v1273 = vpop.f32.mrb[0].mxu0
        %v1274 = vadd.f32 0.0, %v1273
        %v1275 = vpop.f32.mrb[0].mxu0
        %v1276 = vpop.f32.mrb[0].mxu0
        %v1277 = vadd.f32 0.0, %v1276
        %v1278 = vpop.f32.mrb[0].mxu0
        %1279 = vmatprep.mubr.bf16.mxu0 0
        %1280 = vmatmul.mubr.bf16.gmra.mrb[0].mxu0 %v1133
        %v1281 = vpop.f32.mrb[0].mxu0
        %v1282 = vadd.f32 0.0, %v1281
        %v1283 = vpop.f32.mrb[0].mxu0
        %v1284 = vpop.f32.mrb[0].mxu0
        %v1285 = vadd.f32 0.0, %v1284
        %v1286 = vpop.f32.mrb[0].mxu0
        %1287 = vmatprep.mubr.bf16.mxu0 0
        %1288 = vmatmul.mubr.bf16.gmra.mrb[0].mxu0 %v1134
        %v1289 = vpop.f32.mrb[0].mxu0
        %v1290 = vadd.f32 0.0, %v1289
        %v1291 = vpop.f32.mrb[0].mxu0
        %v1292 = vpop.f32.mrb[0].mxu0
        %v1293 = vadd.f32 0.0, %v1292
        %v1294 = vpop.f32.mrb[0].mxu0
        %1295 = vdwg.mxu0
        %v1296 = vpack.c.bf16 %v1237, %v1234
        %v1297 = vpack.c.bf16 %v1245, %v1242
        %v1298 = vpack.c.bf16 %v1253, %v1250
        %v1299 = vpack.c.bf16 %v1261, %v1258
        %v1300 = vpack.c.bf16 %v1269, %v1266
        %v1301 = vpack.c.bf16 %v1277, %v1274
        %v1302 = vpack.c.bf16 %v1285, %v1282
        %v1303 = vpack.c.bf16 %v1293, %v1290
        %v1304 = vld [vmem:[%s8] sm:$0x1]
        %v1306 = vlaneseq
        %v1307 = vshrl.u32 %v1306, 7
        %v1308 = vsub.s32 0, %v1307
        %v1309 = vrot.slane %v1304, %v1308
        %1311 = vmatprep.subr.bf16.mxu0 0
        %1312 = vmatpush1.bf16.msra.mxu0 %v1296
        %1313 = vmatprep.subr.bf16.mxu0 0
        %1314 = vmatpush1.bf16.msra.mxu0 %v1297
        %1315 = vmatprep.subr.bf16.mxu0 0
        %1316 = vmatpush1.bf16.msra.mxu0 %v1298
        %1317 = vmatprep.subr.bf16.mxu0 0
        %1318 = vmatpush1.bf16.msra.mxu0 %v1299
        %1319 = vmatprep.subr.bf16.mxu0 0
        %1320 = vmatpush1.bf16.msra.mxu0 %v1300
        %1321 = vmatprep.subr.bf16.mxu0 0
        %1322 = vmatpush1.bf16.msra.mxu0 %v1301
        %1323 = vmatprep.subr.bf16.mxu0 0
        %1324 = vmatpush1.bf16.msra.mxu0 %v1302
        %1325 = vmatprep.subr.bf16.mxu0 0
        %1326 = vmatpush1.bf16.msra.mxu0 %v1303
        %1327 = vmatprep.subr.bf16.mxu0 0
        %1328 = vmatpush1.bf16.msra.mxu0 0
        %1329 = vmatprep.subr.bf16.mxu0 0
        %1330 = vmatpush1.bf16.msra.mxu0 0
        %1331 = vmatprep.subr.bf16.mxu0 0
        %1332 = vmatpush1.bf16.msra.mxu0 0
        %1333 = vmatprep.subr.bf16.mxu0 0
        %1334 = vmatpush1.bf16.msra.mxu0 0
        %1335 = vmatprep.subr.bf16.mxu0 0
        %1336 = vmatpush1.bf16.msra.mxu0 0
        %1337 = vmatprep.subr.bf16.mxu0 0
        %1338 = vmatpush1.bf16.msra.mxu0 0
        %1339 = vmatprep.subr.bf16.mxu0 0
        %1340 = vmatpush1.bf16.msra.mxu0 0
        %1341 = vmatprep.subr.bf16.mxu0 0
        %1342 = vmatpush1.bf16.msra.mxu0 0
        %1343 = vmatprep.mubr.bf16.mxu0 0
        %1344 = vmatmul.mubr.bf16.gmra.mrb[0].mxu0 %v701
        %v1345 = vpop.f32.mrb[0].mxu0
        %v1346 = vadd.f32 %v1309, %v1345
        %v1347 = vpop.f32.mrb[0].mxu0
        %v1348 = vpop.f32.mrb[0].mxu0
        %v1349 = vadd.f32 %v1309, %v1348
        %v1350 = vpop.f32.mrb[0].mxu0
        %1351 = vmatprep.mubr.bf16.mxu0 0
        %1352 = vmatmul.mubr.bf16.gmra.mrb[0].mxu0 %v702
        %v1353 = vpop.f32.mrb[0].mxu0
        %v1354 = vadd.f32 %v1309, %v1353
        %v1355 = vpop.f32.mrb[0].mxu0
        %v1356 = vpop.f32.mrb[0].mxu0
        %v1357 = vadd.f32 %v1309, %v1356
        %v1358 = vpop.f32.mrb[0].mxu0
        %1359 = vmatprep.mubr.bf16.mxu0 0
        %1360 = vmatmul.mubr.bf16.gmra.mrb[0].mxu0 %v703
        %v1361 = vpop.f32.mrb[0].mxu0
        %v1362 = vadd.f32 %v1309, %v1361
        %v1363 = vpop.f32.mrb[0].mxu0
        %v1364 = vpop.f32.mrb[0].mxu0
        %v1365 = vadd.f32 %v1309, %v1364
        %v1366 = vpop.f32.mrb[0].mxu0
        %1367 = vmatprep.mubr.bf16.mxu0 0
        %1368 = vmatmul.mubr.bf16.gmra.mrb[0].mxu0 %v704
        %v1369 = vpop.f32.mrb[0].mxu0
        %v1370 = vadd.f32 %v1309, %v1369
        %v1371 = vpop.f32.mrb[0].mxu0
        %v1372 = vpop.f32.mrb[0].mxu0
        %v1373 = vadd.f32 %v1309, %v1372
        %v1374 = vpop.f32.mrb[0].mxu0
        %1375 = vmatprep.mubr.bf16.mxu0 0
        %1376 = vmatmul.mubr.bf16.gmra.mrb[0].mxu0 %v705
        %v1377 = vpop.f32.mrb[0].mxu0
        %v1378 = vadd.f32 %v1309, %v1377
        %v1379 = vpop.f32.mrb[0].mxu0
        %v1380 = vpop.f32.mrb[0].mxu0
        %v1381 = vadd.f32 %v1309, %v1380
        %v1382 = vpop.f32.mrb[0].mxu0
        %1383 = vmatprep.mubr.bf16.mxu0 0
        %1384 = vmatmul.mubr.bf16.gmra.mrb[0].mxu0 %v706
        %v1385 = vpop.f32.mrb[0].mxu0
        %v1386 = vadd.f32 %v1309, %v1385
        %v1387 = vpop.f32.mrb[0].mxu0
        %v1388 = vpop.f32.mrb[0].mxu0
        %v1389 = vadd.f32 %v1309, %v1388
        %v1390 = vpop.f32.mrb[0].mxu0
        %1391 = vmatprep.mubr.bf16.mxu0 0
        %1392 = vmatmul.mubr.bf16.gmra.mrb[0].mxu0 %v707
        %v1393 = vpop.f32.mrb[0].mxu0
        %v1394 = vadd.f32 %v1309, %v1393
        %v1395 = vpop.f32.mrb[0].mxu0
        %v1396 = vpop.f32.mrb[0].mxu0
        %v1397 = vadd.f32 %v1309, %v1396
        %v1398 = vpop.f32.mrb[0].mxu0
        %1399 = vmatprep.mubr.bf16.mxu0 0
        %1400 = vmatmul.mubr.bf16.gmra.mrb[0].mxu0 %v708
        %v1401 = vpop.f32.mrb[0].mxu0
        %v1402 = vadd.f32 %v1309, %v1401
        %v1403 = vpop.f32.mrb[0].mxu0
        %v1404 = vpop.f32.mrb[0].mxu0
        %v1405 = vadd.f32 %v1309, %v1404
        %v1406 = vpop.f32.mrb[0].mxu0
        %1407 = vdwg.mxu0
        %v1408 = vmax.f32 %v1346, 0.0
        %v1409 = vmax.f32 %v1349, 0.0
        %v1410 = vmax.f32 %v1354, 0.0
        %v1411 = vmax.f32 %v1357, 0.0
        %v1412 = vmax.f32 %v1362, 0.0
        %v1413 = vmax.f32 %v1365, 0.0
        %v1414 = vmax.f32 %v1370, 0.0
        %v1415 = vmax.f32 %v1373, 0.0
        %v1416 = vmax.f32 %v1378, 0.0
        %v1417 = vmax.f32 %v1381, 0.0
        %v1418 = vmax.f32 %v1386, 0.0
        %v1419 = vmax.f32 %v1389, 0.0
        %v1420 = vmax.f32 %v1394, 0.0
        %v1421 = vmax.f32 %v1397, 0.0
        %v1422 = vmax.f32 %v1402, 0.0
        %v1423 = vmax.f32 %v1405, 0.0
        %v1424 = vlaneseq
        %v1425 = vshrl.u32 %v1424, 7
        %v1426 = vadd.s32 %v1425, 8
        %v1427 = vadd.s32 %v1425, 16
        %v1428 = vadd.s32 %v1425, 24
        %v1429 = vadd.s32 %v1425, 32
        %v1430 = vadd.s32 %v1425, 40
        %v1431 = vadd.s32 %v1425, 48
        %v1432 = vadd.s32 %v1425, 56
        %v1433 = vadd.s32 %v1425, 64
        %v1434 = vadd.s32 %v1425, 72
        %v1435 = vadd.s32 %v1425, 80
        %v1436 = vadd.s32 %v1425, 88
        %v1437 = vadd.s32 %v1425, 96
        %v1438 = vadd.s32 %v1425, 104
        %v1439 = vadd.s32 %v1425, 112
        %v1440 = vadd.s32 %v1425, 120
        %s1441 = sld [smem:[#allocation3 + %s34]]
        %v1442 = vstv %s1441
        %vm1443 = vcmp.lt.s32.totalorder %v1425, %v1442
        %vm1444 = vcmp.lt.s32.totalorder %v1426, %v1442
        %vm1445 = vcmp.lt.s32.totalorder %v1427, %v1442
        %vm1446 = vcmp.lt.s32.totalorder %v1428, %v1442
        %vm1447 = vcmp.lt.s32.totalorder %v1429, %v1442
        %vm1448 = vcmp.lt.s32.totalorder %v1430, %v1442
        %vm1449 = vcmp.lt.s32.totalorder %v1431, %v1442
        %vm1450 = vcmp.lt.s32.totalorder %v1432, %v1442
        %vm1451 = vcmp.lt.s32.totalorder %v1433, %v1442
        %vm1452 = vcmp.lt.s32.totalorder %v1434, %v1442
        %vm1453 = vcmp.lt.s32.totalorder %v1435, %v1442
        %vm1454 = vcmp.lt.s32.totalorder %v1436, %v1442
        %vm1455 = vcmp.lt.s32.totalorder %v1437, %v1442
        %vm1456 = vcmp.lt.s32.totalorder %v1438, %v1442
        %vm1457 = vcmp.lt.s32.totalorder %v1439, %v1442
        %vm1458 = vcmp.lt.s32.totalorder %v1440, %v1442
        %v1459 = vsel %vm1443, 1, 0
        %v1460 = vsel %vm1444, 1, 0
        %v1461 = vsel %vm1445, 1, 0
        %v1462 = vsel %vm1446, 1, 0
        %v1463 = vsel %vm1447, 1, 0
        %v1464 = vsel %vm1448, 1, 0
        %v1465 = vsel %vm1449, 1, 0
        %v1466 = vsel %vm1450, 1, 0
        %v1467 = vsel %vm1451, 1, 0
        %v1468 = vsel %vm1452, 1, 0
        %v1469 = vsel %vm1453, 1, 0
        %v1470 = vsel %vm1454, 1, 0
        %v1471 = vsel %vm1455, 1, 0
        %v1472 = vsel %vm1456, 1, 0
        %v1473 = vsel %vm1457, 1, 0
        %v1474 = vsel %vm1458, 1, 0
        %vm1475 = vcmp.eq.s32.totalorder %v1459, 1
        %vm1476 = vcmp.eq.s32.totalorder %v1460, 1
        %vm1477 = vcmp.eq.s32.totalorder %v1461, 1
        %vm1478 = vcmp.eq.s32.totalorder %v1462, 1
        %vm1479 = vcmp.eq.s32.totalorder %v1463, 1
        %vm1480 = vcmp.eq.s32.totalorder %v1464, 1
        %vm1481 = vcmp.eq.s32.totalorder %v1465, 1
        %vm1482 = vcmp.eq.s32.totalorder %v1466, 1
        %vm1483 = vcmp.eq.s32.totalorder %v1467, 1
        %vm1484 = vcmp.eq.s32.totalorder %v1468, 1
        %vm1485 = vcmp.eq.s32.totalorder %v1469, 1
        %vm1486 = vcmp.eq.s32.totalorder %v1470, 1
        %vm1487 = vcmp.eq.s32.totalorder %v1471, 1
        %vm1488 = vcmp.eq.s32.totalorder %v1472, 1
        %vm1489 = vcmp.eq.s32.totalorder %v1473, 1
        %vm1490 = vcmp.eq.s32.totalorder %v1474, 1
        %v1491 = vsel %vm1475, %v1408, 0.0
        %v1492 = vsel %vm1476, %v1409, 0.0
        %v1493 = vsel %vm1477, %v1410, 0.0
        %v1494 = vsel %vm1478, %v1411, 0.0
        %v1495 = vsel %vm1479, %v1412, 0.0
        %v1496 = vsel %vm1480, %v1413, 0.0
        %v1497 = vsel %vm1481, %v1414, 0.0
        %v1498 = vsel %vm1482, %v1415, 0.0
        %v1499 = vsel %vm1483, %v1416, 0.0
        %v1500 = vsel %vm1484, %v1417, 0.0
        %v1501 = vsel %vm1485, %v1418, 0.0
        %v1502 = vsel %vm1486, %v1419, 0.0
        %v1503 = vsel %vm1487, %v1420, 0.0
        %v1504 = vsel %vm1488, %v1421, 0.0
        %v1505 = vsel %vm1489, %v1422, 0.0
        %v1506 = vsel %vm1490, %v1423, 0.0
        %1507 = vst [vmem:[%s411] sm:$0xff] %v1491
        %1508 = vst [vmem:[%s411 + $0x8] sm:$0xff] %v1492
        %1509 = vst [vmem:[%s411 + $0x10] sm:$0xff] %v1493
        %1510 = vst [vmem:[%s411 + $0x18] sm:$0xff] %v1494
        %1511 = vst [vmem:[%s411 + $0x20] sm:$0xff] %v1495
        %1512 = vst [vmem:[%s411 + $0x28] sm:$0xff] %v1496
        %1513 = vst [vmem:[%s411 + $0x30] sm:$0xff] %v1497
        %1514 = vst [vmem:[%s411 + $0x38] sm:$0xff] %v1498
        %1515 = vst [vmem:[%s411 + $0x40] sm:$0xff] %v1499
        %1516 = vst [vmem:[%s411 + $0x48] sm:$0xff] %v1500
        %1517 = vst [vmem:[%s411 + $0x50] sm:$0xff] %v1501
        %1518 = vst [vmem:[%s411 + $0x58] sm:$0xff] %v1502
        %1519 = vst [vmem:[%s411 + $0x60] sm:$0xff] %v1503
        %1520 = vst [vmem:[%s411 + $0x68] sm:$0xff] %v1504
        %1521 = vst [vmem:[%s411 + $0x70] sm:$0xff] %v1505
        %1522 = vst [vmem:[%s411 + $0x78] sm:$0xff] %v1506
        %s1523 = sand.u32 %s220, 1
        %s1524 = scalar_lea.sflag [#allocation6], %s1523
        %s1525 = sand.u32 %s220, 1
        %s1526 = smul.addr %s1525, 128
        %s1527 = scalar_lea.vmem [#allocation13], %s1526
        // Predicated region
        $region73: #{gnn_encoder_forward.1} parent=51 // pred_check
          %p1528 = pneg %p230
        $region74: #{gnn_encoder_forward.1} parent=51 // pred_check_branch
          %1530 = sbr.rel (%p1528) target = $region76
        $region75: #{gnn_encoder_forward.1} parent=51 // pred_region
          %s1532 = ssub.s32 2048, 2048
          %1533 = vsyncadd %s1524, %s1532
          %s1534 = smul.addr %s34, 16
          %s1535 = smul.addr %s1534, 128
          %s1536 = scalar_lea.hbm %s9, %s1535
          %s1537 = sshll.u32 %s1527, 4
          %s1538 = int_to_ptr.vmem [resolvable:$true] %s1537
          %1543 = dma.vmem_to_hbm [thread:$0]  %s1538, 2048, %s1536, %s1524, 128, 128, 8
        $region76: #{gnn_encoder_forward.1} parent=51 // pred_fallthru
          _
      $region52: #{gnn_encoder_forward.1} parent=5 // pred_fallthru
        _
      %p1544 = scmp.le.s32.totalorder 2, %s29
      // Predicated region
      $region77: #{gnn_encoder_forward.1} parent=5 // pred_check
        %p1545 = pneg %p1544
      $region78: #{gnn_encoder_forward.1} parent=5 // pred_check_branch
        %1547 = sbr.rel (%p1545) target = $region80
      $region79: #{gnn_encoder_forward.1} parent=5 // pred_region
        %s1548 = ssub.s32 %s29, 2
        // Predicated region
        $region81: #{gnn_encoder_forward.1} parent=79 // pred_check
          %p1549 = pneg %p236
        $region82: #{gnn_encoder_forward.1} parent=79 // pred_check_branch
          %1551 = sbr.rel (%p1549) target = $region84
        $region83: #{gnn_encoder_forward.1} parent=79 // pred_region
          %s1552 = sand.u32 %s221, 1
          %s1553 = scalar_lea.sflag [#allocation6], %s1552
          %s1554 = sand.u32 %s221, 1
          %s1555 = smul.addr %s1554, 128
          %s1556 = scalar_lea.vmem [#allocation13], %s1555
          %1557 = dma.done %s1553, 2048
        $region84: #{gnn_encoder_forward.1} parent=79 // pred_fallthru
          _
      $region80: #{gnn_encoder_forward.1} parent=5 // pred_fallthru
        _
    $region6: #{gnn_encoder_forward.1} parent=1 // loop_footer
      %s33 = sadd.s32 1, %s29
    $region7: #{gnn_encoder_forward.1} parent=1 // loop_footer_branch
      %28 = sbr.rel target = $region3
    $region8: #{gnn_encoder_forward.1} parent=1 // loop_exit
      _
    %1558 = vsyncpa [#allocation5], 1
    %s1559 = scalar_lea.sflag [#allocation5], 1
    %1560 = vsyncpa %s1559, 1
    %1561 = vsyncpa [#allocation8], 1
    %s1562 = scalar_lea.sflag [#allocation8], 1
    %1563 = vsyncpa %s1562, 1
    %1564 = vsyncpa [#allocation11], 1
    %1565 = vsyncpa [#allocation6], 1
    %s1566 = scalar_lea.sflag [#allocation6], 1
    %1567 = vsyncpa %s1566, 1

</llo_original>
